<compile_context>
chip_gen: v7x
topology: tpu7x:2x2x1
jax: 0.10.0
libtpu: 0.0.40
codegen_flags: <defaults>
</compile_context>

<pallas_src>
import functools

import jax
import jax.numpy as jnp
from jax import lax
from jax.experimental import pallas as pl
from jax.experimental.pallas import tpu as pltpu


def _round_up(x, m):
    return (x + m - 1) // m * m


def _vmem_caps():
    """Per-generation scoped-VMEM limit + the budget usable for tile sizing."""
    try:
        cap = int(pltpu.get_tpu_info().vmem_capacity_bytes)
    except Exception:
        cap = 64 << 20               # conservative fallback (v7x: 64 MiB per TC)
    limit = int(min(cap - (16 << 20), cap * 3 // 4))  # ~48 MiB v7x, ~96 MiB v5e/v6e
    limit = max(32 << 20, min(limit, 100 << 20))
    tile_budget = int(limit * 0.8)
    return limit, tile_budget


def _largest_tile(candidates, extent, fits):
    """Largest candidate (descending) dividing `extent` that fits the budget."""
    divs = [c for c in candidates if c <= extent and extent % c == 0]
    if not divs:
        divs = [min(candidates[-1], extent)]
    for c in divs:
        if fits(c):
            return c
    return divs[-1]


# --------------------------------------------------------------------------- #
# Kernels
# --------------------------------------------------------------------------- #
def _prep_kernel(a_ref, *out_refs, with_cast):
    """Stream f32 row tiles of A exactly once: emit in-degrees (row sums),
    out-degrees (column sums, accumulated across the 'arbitrary' grid axis) and,
    fused, the propagate-dtype copy of A (no separate HBM cast pass)."""
    if with_cast:
        indeg_ref, outdeg_ref, acast_ref = out_refs
    else:
        indeg_ref, outdeg_ref = out_refs
    i = pl.program_id(0)
    a = a_ref[...]                                            # (TM, Np) f32
    indeg_ref[...] = jnp.sum(a, axis=1, keepdims=True)        # (TM, 1)

    @pl.when(i == 0)
    def _():
        outdeg_ref[...] = jnp.zeros_like(outdeg_ref)

    outdeg_ref[...] += jnp.sum(a, axis=0, keepdims=True)      # (1, Np)
    if with_cast:
        acast_ref[...] = a.astype(acast_ref.dtype)            # (TM, Np) bf16


def _project_kernel(x_ref, w_ref, s_ref, b_ref, o_ref, *, add_bias, dp_strips):
    """o[tile] = s[tile] * (X[tile] @ W)  (+ b when k == 0).
    Epilogue applied per 128-lane strip to bound vreg pressure."""
    y = jnp.dot(x_ref[...], w_ref[...], preferred_element_type=jnp.float32)
    s = s_ref[...]
    for t in range(dp_strips):
        sl = slice(t * 128, (t + 1) * 128)
        yt = s * y[:, sl]
        if add_bias:
            yt = yt + b_ref[:, sl]
        o_ref[:, sl] = yt.astype(o_ref.dtype)


def _hop_kernel(*refs, add_bias, dp_strips):
    """One propagation hop, tiled (dst rows 'parallel') x (src cols 'arbitrary'):
        acc += A[i, j] @ h[j]        (f32 accumulator in VMEM scratch)
        o[i] = s[i] * acc (+ b)      on the last source-column step.
    The source-side degree scale is already folded into h, so A_hat is never
    built. Epilogue applied per 128-lane strip."""
    if add_bias:
        a_ref, h_ref, s_ref, b_ref, o_ref, acc_ref = refs
    else:
        a_ref, h_ref, s_ref, o_ref, acc_ref = refs
        b_ref = None
    j = pl.program_id(1)

    @pl.when(j == 0)
    def _():
        acc_ref[...] = jnp.zeros_like(acc_ref)

    acc_ref[...] += jnp.dot(a_ref[...], h_ref[...],
                            preferred_element_type=jnp.float32)

    @pl.when(j == pl.num_programs(1) - 1)
    def _():
        s = s_ref[...]
        for t in range(dp_strips):
            sl = slice(t * 128, (t + 1) * 128)
            y = s * acc_ref[:, sl]
            if add_bias:
                y = y + b_ref[:, sl]
            o_ref[:, sl] = y.astype(o_ref.dtype)


# --------------------------------------------------------------------------- #
# Wrapper
# --------------------------------------------------------------------------- #
@functools.partial(jax.jit, static_argnames=("k", "norm", "propagate_dtype"))
def sgconv_forward(adj, feat, weight=None, bias=None, *, k=1, norm="both",
                   propagate_dtype=jnp.bfloat16):
    """Pallas SGConv forward.

    adj    : (N, N) dense adjacency with self loops added, adj[dst, src]
    feat   : (N, D_in)
    weight : (D_in, D_out) or None (no linear layer)
    bias   : (D_out,) / (1, D_out) or None
    propagate_dtype : dtype of A / h in the propagation matmuls (f32 accumulation
        always). bf16 default: the hop is HBM-bound on A and 0/1 weights are exact.
    """
    if norm not in ("none", "both", "right", "left"):
        raise ValueError(f'Invalid norm value "{norm}".')

    f32 = jnp.float32
    prop_dt = jnp.dtype(propagate_dtype)
    n, d_in = feat.shape
    if weight is None:
        weight = jnp.eye(d_in, dtype=f32)            # "no linear layer" path
    d_out = weight.shape[1]

    dp = _round_up(d_out, 128)                       # lane-dense propagation width
    np_ = _round_up(n, 128)
    dp_strips = dp // 128

    limit, tile_budget = _vmem_caps()

    def params(semantics):
        return pltpu.CompilerParams(dimension_semantics=semantics,
                                    vmem_limit_bytes=limit)

    # ---- adjacency prep: degrees + fused propagate-dtype cast ----------------
    need_deg = (k > 0) and (norm != "none")
    need_cast = (k > 0) and (prop_dt != jnp.dtype(f32))
    s_dst = s_src = None
    adj_prop = None

    if k > 0:
        if np_ == n and adj.dtype == jnp.dtype(f32):
            adj_f32 = adj                            # skip the pad copy entirely
        else:
            adj_f32 = jnp.pad(adj.astype(f32), ((0, np_ - n), (0, np_ - n)))

        if need_deg or need_cast:
            isz_p = prop_dt.itemsize

            def prep_fits(t):
                fp = 2 * t * np_ * 4 + 2 * t * 4 + 2 * np_ * 4
                if need_cast:
                    fp += 2 * t * np_ * isz_p
                return fp <= tile_budget

            tm_prep = _largest_tile([512, 256, 128, 64, 32, 16], np_, prep_fits)

            out_shape = [jax.ShapeDtypeStruct((np_, 1), f32),
                         jax.ShapeDtypeStruct((1, np_), f32)]
            out_specs = [pl.BlockSpec((tm_prep, 1), lambda i: (i, 0)),
                         pl.BlockSpec((1, np_), lambda i: (0, 0))]
            if need_cast:
                out_shape.append(jax.ShapeDtypeStruct((np_, np_), prop_dt))
                out_specs.append(pl.BlockSpec((tm_prep, np_), lambda i: (i, 0)))

            outs = pl.pallas_call(
                functools.partial(_prep_kernel, with_cast=need_cast),
                out_shape=tuple(out_shape),
                grid=(np_ // tm_prep,),
                in_specs=[pl.BlockSpec((tm_prep, np_), lambda i: (i, 0))],
                out_specs=tuple(out_specs),
                compiler_params=params(("arbitrary",)),      # out-deg accumulates
                cost_estimate=pl.CostEstimate(
                    flops=2 * np_ * np_, transcendentals=0,
                    bytes_accessed=np_ * np_ * (4 + (isz_p if need_cast else 0))
                    + 8 * np_),
            )(adj_f32)

            if need_cast:
                in_deg, out_deg, adj_prop = outs
            else:
                in_deg, out_deg = outs
                adj_prop = adj_f32
        else:
            adj_prop = adj_f32

        if need_deg:
            in_deg = jnp.maximum(in_deg, 1.0)                    # (Np,1) dst deg
            out_deg = jnp.maximum(out_deg.reshape(np_, 1), 1.0)  # (Np,1) src deg
            if norm == "both":
                s_dst, s_src = lax.rsqrt(in_deg), lax.rsqrt(out_deg)
            elif norm == "right":
                s_dst, s_src = 1.0 / in_deg, jnp.ones_like(out_deg)
            else:  # "left"
                s_dst, s_src = jnp.ones_like(in_deg), 1.0 / out_deg
        else:
            s_dst = jnp.ones((np_, 1), f32)
            s_src = jnp.ones((np_, 1), f32)

    # ---- linear projection FIRST: (A^K X) W == A^K (X W) ---------------------
    x_dt = prop_dt if (k > 0 and prop_dt != jnp.dtype(f32)) else f32
    feat_c = feat.astype(x_dt)
    if np_ != n:
        feat_c = jnp.pad(feat_c, ((0, np_ - n), (0, 0)))
    w_c = weight.astype(x_dt)
    if dp != d_out:
        w_c = jnp.pad(w_c, ((0, 0), (0, dp - d_out)))
    b_vec = jnp.zeros((d_out,), f32) if bias is None else bias.reshape(-1).astype(f32)
    b_p = jnp.pad(b_vec, (0, dp - d_out)).reshape(1, dp)

    s_proj = jnp.ones((np_, 1), f32) if k == 0 else s_src
    proj_out_dt = f32 if k == 0 else prop_dt
    xsz = jnp.dtype(x_dt).itemsize

    def proj_fits(t):
        return (2 * t * d_in * xsz + 2 * d_in * dp * xsz
                + 2 * t * dp * 4 + 2 * t * 4 + 2 * dp * 4) <= tile_budget

    tm_proj = _largest_tile([512, 256, 128], np_, proj_fits)
    # TODO(synk): tile d_in (reduction) in the projection for very large D_in.

    h = pl.pallas_call(
        functools.partial(_project_kernel, add_bias=(k == 0), dp_strips=dp_strips),
        out_shape=jax.ShapeDtypeStruct((np_, dp), proj_out_dt),
        grid=(np_ // tm_proj,),
        in_specs=[
            pl.BlockSpec((tm_proj, d_in), lambda i: (i, 0)),
            pl.BlockSpec((d_in, dp), lambda i: (0, 0)),
            pl.BlockSpec((tm_proj, 1), lambda i: (i, 0)),
            pl.BlockSpec((1, dp), lambda i: (0, 0)),
        ],
        out_specs=pl.BlockSpec((tm_proj, dp), lambda i: (i, 0)),
        compiler_params=params(("parallel",)),
        cost_estimate=pl.CostEstimate(
            flops=2 * np_ * d_in * dp, transcendentals=0,
            bytes_accessed=np_ * d_in * xsz + d_in * dp * xsz + np_ * dp * 4),
    )(feat_c, w_c, s_proj, b_p)

    # ---- K propagation hops (row x source-column tiled, f32 accumulator) -----
    if k > 0:
        isz_a = jnp.dtype(adj_prop.dtype).itemsize
        isz_h = prop_dt.itemsize

        def hop_fits(tm, tk):
            return (2 * tm * tk * isz_a        # A tile (double-buffered)
                    + 2 * tk * dp * isz_h      # h tile
                    + 2 * tm * dp * 4          # output tile (f32 worst case)
                    + tm * dp * 4              # f32 accumulator scratch
                    + 2 * (tm + dp) * 4        # scale + bias
                    ) <= tile_budget

        tm = _largest_tile([512, 256, 128], np_, lambda t: hop_fits(t, 128))
        tk_cands = sorted({c for c in (np_, 16384, 8192, 4096, 2048, 1024, 512,
                                       256, 128) if c <= np_ and np_ % c == 0},
                          reverse=True)
        tk = _largest_tile(tk_cands, np_, lambda t: hop_fits(tm, t))
        grid = (np_ // tm, np_ // tk)
        # TODO(synk): tile the output width dp as a third grid axis for very
        #   large D_out.

        s_mid = (s_dst * s_src).astype(f32)          # fold next hop's src scale
        hop_cost = pl.CostEstimate(
            flops=2 * np_ * np_ * dp, transcendentals=0,
            bytes_accessed=np_ * np_ * isz_a + (np_ // tm) * np_ * dp * isz_h
            + np_ * dp * 4 + 8 * np_)

        def hop_call(h_in, scale, add_bias, out_dt):
            in_specs = [
                pl.BlockSpec((tm, tk), lambda i, j: (i, j)),     # A tile
                pl.BlockSpec((tk, dp), lambda i, j: (j, 0)),     # h tile
                pl.BlockSpec((tm, 1), lambda i, j: (i, 0)),      # dst-row scale
            ]
            args = [adj_prop, h_in, scale]
            if add_bias:                                          # final hop only
                in_specs.append(pl.BlockSpec((1, dp), lambda i, j: (0, 0)))
                args.append(b_p)
            return pl.pallas_call(
                functools.partial(_hop_kernel, add_bias=add_bias,
                                  dp_strips=dp_strips),
                out_shape=jax.ShapeDtypeStruct((np_, dp), out_dt),
                grid=grid,
                in_specs=in_specs,
                out_specs=pl.BlockSpec((tm, dp), lambda i, j: (i, 0)),
                scratch_shapes=[pltpu.VMEM((tm, dp), jnp.float32)],
                compiler_params=params(("parallel", "arbitrary")),
                cost_estimate=hop_cost,
            )(*args)

        # TODO(synk): small-N fast path — keep A fully VMEM-resident across all K
        #   hops in one pallas_call (h ping-ponged in scratch, pl.Buffered(1) on
        #   the invariant A block) to cut A HBM traffic ~K×.
        # TODO(synk): on v7x, store adj_prop in fp8 (e4m3) when edge weights are
        #   exactly representable (0/1) to halve A traffic again vs bf16.
        for _ in range(k - 1):
            h = hop_call(h, s_mid, add_bias=False, out_dt=prop_dt)
        h = hop_call(h, s_dst, add_bias=True, out_dt=f32)

    return h[:n, :d_out]


# --------------------------------------------------------------------------- #
# Pure-JAX reference (original operation order)
# --------------------------------------------------------------------------- #
def _reference(adj, feat, weight, bias, *, k, norm):
    in_deg = jnp.maximum(adj.sum(axis=1, keepdims=True), 1.0)
    out_deg = jnp.maximum(adj.sum(axis=0, keepdims=True), 1.0)
    if norm == "both":
        a_hat = adj * lax.rsqrt(in_deg) * lax.rsqrt(out_deg)
    elif norm == "right":
        a_hat = adj / in_deg
    elif norm == "left":
        a_hat = adj / out_deg
    else:
        a_hat = adj
    h = feat
    for _ in range(k):
        h = a_hat @ h
    return h @ weight + bias


if __name__ == "__main__":
    def make_problem(key, n, d_in, d_out, p_edge=0.05):
        k_adj, k_feat, k_w = jax.random.split(key, 3)
        adj = (jax.random.uniform(k_adj, (n, n)) < p_edge).astype(jnp.float32)
        adj = jnp.maximum(adj, jnp.eye(n, dtype=jnp.float32))   # add_self_loop
        feat = jax.random.normal(k_feat, (n, d_in), dtype=jnp.float32)
        lim = (6.0 / (d_in + d_out)) ** 0.5                     # Glorot uniform
        weight = jax.random.uniform(k_w, (d_in, d_out), dtype=jnp.float32,
                                    minval=-lim, maxval=lim)
        bias = jnp.zeros((d_out,), dtype=jnp.float32)           # zero-init bias
        return adj, feat, weight, bias

    # Main problem: N=128 nodes, D_in=64, D_out=32, K=2 hops.
    N, D_IN, D_OUT, K = 128, 64, 32, 2
    adj, feat, weight, bias = make_problem(jax.random.PRNGKey(0), N, D_IN, D_OUT)

    # f32 propagation: exact math check for every normalization mode.
    for norm in ("both", "right", "left", "none"):
        ref = _reference(adj, feat, weight, bias.reshape(1, -1), k=K, norm=norm)
        out = jax.block_until_ready(
            sgconv_forward(adj, feat, weight, bias, k=K, norm=norm,
                           propagate_dtype=jnp.float32))
        assert out.shape == (N, D_OUT)
        assert jnp.allclose(out, ref, atol=1e-4, rtol=1e-4), f"norm={norm}"

    # k=1, f32.
    ref1 = _reference(adj, feat, weight, bias.reshape(1, -1), k=1, norm="both")
    out1 = jax.block_until_ready(
        sgconv_forward(adj, feat, weight, bias, k=1, norm="both",
                       propagate_dtype=jnp.float32))
    assert jnp.allclose(out1, ref1, atol=1e-4, rtol=1e-4)

    # Default bf16 propagation (A cast fused into the degree pass) — looser tol.
    ref = _reference(adj, feat, weight, bias.reshape(1, -1), k=K, norm="both")
    out_bf16 = jax.block_until_ready(
        sgconv_forward(adj, feat, weight, bias, k=K, norm="both"))
    assert jnp.allclose(out_bf16, ref, atol=5e-2, rtol=5e-2)

    # Padding path: N / D_in / D_out not multiples of 128.
    N2, D_IN2, D_OUT2 = 96, 40, 24
    adj2, feat2, weight2, bias2 = make_problem(jax.random.PRNGKey(1),
                                               N2, D_IN2, D_OUT2)
    ref2 = _reference(adj2, feat2, weight2, bias2.reshape(1, -1), k=2, norm="both")
    out2 = jax.block_until_ready(
        sgconv_forward(adj2, feat2, weight2, bias2, k=2, norm="both",
                       propagate_dtype=jnp.float32))
    assert out2.shape == (N2, D_OUT2)
    assert jnp.allclose(out2, ref2, atol=1e-4, rtol=1e-4)

    print("KERNEL_OK")
</pallas_src>

<mosaic_0001>
module attributes {stable_mosaic.version = 11 : i64} {
  func.func @_project_kernel(%arg0: i32, %arg1: memref<128x64xf32, #tpu.memory_space<vmem>>, %arg2: memref<64x128xf32, #tpu.memory_space<vmem>>, %arg3: memref<128x1xf32, #tpu.memory_space<vmem>>, %arg4: memref<1x128xf32, #tpu.memory_space<vmem>>, %arg5: memref<128x128xf32, #tpu.memory_space<vmem>>) attributes {dimension_semantics = [#tpu.dimension_semantics<parallel>], iteration_bounds = array<i64: 1>, scalar_prefetch = 0 : i64, scratch_operands = 0 : i64, tpu.core_type = #tpu.core_type<tc>, window_params = [{transform_indices = @transform_0, window_bounds = array<i64: 128, 64>}, {pipeline_mode = #tpu.pipeline_mode<synchronous>, transform_indices = @transform_1, window_bounds = array<i64: 64, 128>}, {transform_indices = @transform_2, window_bounds = array<i64: 128, 1>}, {pipeline_mode = #tpu.pipeline_mode<synchronous>, transform_indices = @transform_3, window_bounds = array<i64: 1, 128>}, {transform_indices = @transform_4, window_bounds = array<i64: 128, 128>}]} {
    %c0 = arith.constant 0 : index
    %c0_0 = arith.constant 0 : index
    %0 = vector.load %arg1[%c0, %c0_0] : memref<128x64xf32, #tpu.memory_space<vmem>>, vector<128x64xf32>
    %c0_1 = arith.constant 0 : index
    %c0_2 = arith.constant 0 : index
    %1 = vector.load %arg2[%c0_1, %c0_2] : memref<64x128xf32, #tpu.memory_space<vmem>>, vector<64x128xf32>
    %cst = arith.constant dense<0.000000e+00> : vector<128x128xf32>
    %2 = tpu.matmul %0, %1, %cst {dimension_numbers = #tpu.dot_dimension_numbers<[1], [0], [0], [1], [0, 0, 1, 1], [], []>} : vector<128x64xf32>, vector<64x128xf32>, vector<128x128xf32> -> vector<128x128xf32>
    %c0_3 = arith.constant 0 : index
    %c0_4 = arith.constant 0 : index
    %3 = vector.load %arg3[%c0_3, %c0_4] : memref<128x1xf32, #tpu.memory_space<vmem>>, vector<128x1xf32>
    %4 = vector.broadcast %3 : vector<128x1xf32> to vector<128x128xf32>
    %5 = arith.mulf %4, %2 : vector<128x128xf32>
    %c0_5 = arith.constant 0 : index
    %c0_6 = arith.constant 0 : index
    %6 = vector.load %arg5[%c0_5, %c0_6] : memref<128x128xf32, #tpu.memory_space<vmem>>, vector<128x128xf32>
    tpu.vector_store %arg5[%c0_5, %c0_6], %5 {strides = array<i32>} : memref<128x128xf32, #tpu.memory_space<vmem>>, vector<128x128xf32>,
    return
  }
  func.func @transform_0(%arg0: i32) -> (i32, i32) {
    %c0_i32 = arith.constant 0 : i32
    %c0_i32_0 = arith.constant 0 : i32
    return %arg0, %c0_i32 : i32, i32
  }
  func.func @transform_1(%arg0: i32) -> (i32, i32) {
    %c0_i32 = arith.constant 0 : i32
    %c0_i32_0 = arith.constant 0 : i32
    %c0_i32_1 = arith.constant 0 : i32
    return %c0_i32, %c0_i32_0 : i32, i32
  }
  func.func @transform_2(%arg0: i32) -> (i32, i32) {
    %c0_i32 = arith.constant 0 : i32
    %c0_i32_0 = arith.constant 0 : i32
    return %arg0, %c0_i32 : i32, i32
  }
  func.func @transform_3(%arg0: i32) -> (i32, i32) {
    %c0_i32 = arith.constant 0 : i32
    %c0_i32_0 = arith.constant 0 : i32
    %c0_i32_1 = arith.constant 0 : i32
    return %c0_i32, %c0_i32_0 : i32, i32
  }
  func.func @transform_4(%arg0: i32) -> (i32, i32) {
    %c0_i32 = arith.constant 0 : i32
    %c0_i32_0 = arith.constant 0 : i32
    return %arg0, %c0_i32 : i32, i32
  }
}

module attributes {stable_mosaic.version = 11 : i64} {
  func.func @_hop_kernel(%arg0: i32, %arg1: i32, %arg2: memref<128x128xf32, #tpu.memory_space<vmem>>, %arg3: memref<128x128xf32, #tpu.memory_space<vmem>>, %arg4: memref<128x1xf32, #tpu.memory_space<vmem>>, %arg5: memref<128x128xf32, #tpu.memory_space<vmem>>, %arg6: memref<128x128xf32, #tpu.memory_space<vmem>>) attributes {dimension_semantics = [#tpu.dimension_semantics<parallel>, #tpu.dimension_semantics<arbitrary>], iteration_bounds = array<i64: 1, 1>, scalar_prefetch = 0 : i64, scratch_operands = 1 : i64, tpu.core_type = #tpu.core_type<tc>, window_params = [{transform_indices = @transform_0, window_bounds = array<i64: 128, 128>}, {transform_indices = @transform_1, window_bounds = array<i64: 128, 128>}, {transform_indices = @transform_2, window_bounds = array<i64: 128, 1>}, {transform_indices = @transform_3, window_bounds = array<i64: 128, 128>}]} {
    %c0_i32 = arith.constant 0 : i32
    %0 = arith.cmpi eq, %arg1, %c0_i32 : i32
    %1 = arith.extui %0 : i1 to i32
    %c0_i32_0 = arith.constant 0 : i32
    %2 = arith.cmpi ne, %1, %c0_i32_0 : i32
    scf.if %2 {
      %cst_10 = arith.constant 0.000000e+00 : f32
      %12 = vector.broadcast %cst_10 : f32 to vector<128x128xf32>
      %c0_11 = arith.constant 0 : index
      %c0_12 = arith.constant 0 : index
      %13 = vector.load %arg6[%c0_11, %c0_12] : memref<128x128xf32, #tpu.memory_space<vmem>>, vector<128x128xf32>
      tpu.vector_store %arg6[%c0_11, %c0_12], %12 {strides = array<i32>} : memref<128x128xf32, #tpu.memory_space<vmem>>, vector<128x128xf32>,
    } else {
    }
    %c0 = arith.constant 0 : index
    %c0_1 = arith.constant 0 : index
    %3 = vector.load %arg6[%c0, %c0_1] : memref<128x128xf32, #tpu.memory_space<vmem>>, vector<128x128xf32>
    %c0_2 = arith.constant 0 : index
    %c0_3 = arith.constant 0 : index
    %4 = vector.load %arg2[%c0_2, %c0_3] : memref<128x128xf32, #tpu.memory_space<vmem>>, vector<128x128xf32>
    %c0_4 = arith.constant 0 : index
    %c0_5 = arith.constant 0 : index
    %5 = vector.load %arg3[%c0_4, %c0_5] : memref<128x128xf32, #tpu.memory_space<vmem>>, vector<128x128xf32>
    %cst = arith.constant dense<0.000000e+00> : vector<128x128xf32>
    %6 = tpu.matmul %4, %5, %cst {dimension_numbers = #tpu.dot_dimension_numbers<[1], [0], [0], [1], [0, 0, 1, 1], [], []>} : vector<128x128xf32>, vector<128x128xf32>, vector<128x128xf32> -> vector<128x128xf32>
    %7 = arith.addf %3, %6 : vector<128x128xf32>
    %c0_6 = arith.constant 0 : index
    %c0_7 = arith.constant 0 : index
    %8 = vector.load %arg6[%c0_6, %c0_7] : memref<128x128xf32, #tpu.memory_space<vmem>>, vector<128x128xf32>
    tpu.vector_store %arg6[%c0_6, %c0_7], %7 {strides = array<i32>} : memref<128x128xf32, #tpu.memory_space<vmem>>, vector<128x128xf32>,
    %c0_i32_8 = arith.constant 0 : i32
    %9 = arith.cmpi eq, %arg1, %c0_i32_8 : i32
    %10 = arith.extui %9 : i1 to i32
    %c0_i32_9 = arith.constant 0 : i32
    %11 = arith.cmpi ne, %10, %c0_i32_9 : i32
    scf.if %11 {
      %c0_10 = arith.constant 0 : index
      %c0_11 = arith.constant 0 : index
      %12 = vector.load %arg4[%c0_10, %c0_11] : memref<128x1xf32, #tpu.memory_space<vmem>>, vector<128x1xf32>
      %c0_12 = arith.constant 0 : index
      %c0_13 = arith.constant 0 : index
      %13 = vector.load %arg6[%c0_12, %c0_13] : memref<128x128xf32, #tpu.memory_space<vmem>>, vector<128x128xf32>
      %14 = vector.broadcast %12 : vector<128x1xf32> to vector<128x128xf32>
      %15 = arith.mulf %14, %13 : vector<128x128xf32>
      %c0_14 = arith.constant 0 : index
      %c0_15 = arith.constant 0 : index
      %16 = vector.load %arg5[%c0_14, %c0_15] : memref<128x128xf32, #tpu.memory_space<vmem>>, vector<128x128xf32>
      tpu.vector_store %arg5[%c0_14, %c0_15], %15 {strides = array<i32>} : memref<128x128xf32, #tpu.memory_space<vmem>>, vector<128x128xf32>,
    } else {
    }
    return
  }
  func.func @transform_0(%arg0: i32, %arg1: i32) -> (i32, i32) {
    %c0_i32 = arith.constant 0 : i32
    return %arg0, %arg1 : i32, i32
  }
  func.func @transform_1(%arg0: i32, %arg1: i32) -> (i32, i32) {
    %c0_i32 = arith.constant 0 : i32
    %c0_i32_0 = arith.constant 0 : i32
    return %arg1, %c0_i32 : i32, i32
  }
  func.func @transform_2(%arg0: i32, %arg1: i32) -> (i32, i32) {
    %c0_i32 = arith.constant 0 : i32
    %c0_i32_0 = arith.constant 0 : i32
    return %arg0, %c0_i32 : i32, i32
  }
  func.func @transform_3(%arg0: i32, %arg1: i32) -> (i32, i32) {
    %c0_i32 = arith.constant 0 : i32
    %c0_i32_0 = arith.constant 0 : i32
    return %arg0, %c0_i32 : i32, i32
  }
}

module attributes {stable_mosaic.version = 11 : i64} {
  func.func @_prep_kernel(%arg0: i32, %arg1: memref<128x128xf32, #tpu.memory_space<vmem>>, %arg2: memref<128x1xf32, #tpu.memory_space<vmem>>, %arg3: memref<1x128xf32, #tpu.memory_space<vmem>>) attributes {dimension_semantics = [#tpu.dimension_semantics<arbitrary>], iteration_bounds = array<i64: 1>, scalar_prefetch = 0 : i64, scratch_operands = 0 : i64, tpu.core_type = #tpu.core_type<tc>, window_params = [{transform_indices = @transform_0, window_bounds = array<i64: 128, 128>}, {transform_indices = @transform_1, window_bounds = array<i64: 128, 1>}, {pipeline_mode = #tpu.pipeline_mode<synchronous>, transform_indices = @transform_2, window_bounds = array<i64: 1, 128>}]} {
    %c0 = arith.constant 0 : index
    %c0_0 = arith.constant 0 : index
    %0 = vector.load %arg1[%c0, %c0_0] : memref<128x128xf32, #tpu.memory_space<vmem>>, vector<128x128xf32>
    %cst = arith.constant dense<0.000000e+00> : vector<128xf32>
    %1 = vector.multi_reduction <add>, %0, %cst [1] : vector<128x128xf32> to vector<128xf32>
    %2 = vector.shape_cast %1 : vector<128xf32> to vector<128x1xf32>
    %c0_1 = arith.constant 0 : index
    %c0_2 = arith.constant 0 : index
    %3 = vector.load %arg2[%c0_1, %c0_2] : memref<128x1xf32, #tpu.memory_space<vmem>>, vector<128x1xf32>
    tpu.vector_store %arg2[%c0_1, %c0_2], %2 {strides = array<i32>} : memref<128x1xf32, #tpu.memory_space<vmem>>, vector<128x1xf32>,
    %c0_i32 = arith.constant 0 : i32
    %4 = arith.cmpi eq, %arg0, %c0_i32 : i32
    %5 = arith.extui %4 : i1 to i32
    %c0_i32_3 = arith.constant 0 : i32
    %6 = arith.cmpi ne, %5, %c0_i32_3 : i32
    scf.if %6 {
      %cst_9 = arith.constant 0.000000e+00 : f32
      %12 = vector.broadcast %cst_9 : f32 to vector<1x128xf32>
      %c0_10 = arith.constant 0 : index
      %c0_11 = arith.constant 0 : index
      %13 = vector.load %arg3[%c0_10, %c0_11] : memref<1x128xf32, #tpu.memory_space<vmem>>, vector<1x128xf32>
      tpu.vector_store %arg3[%c0_10, %c0_11], %12 {strides = array<i32>} : memref<1x128xf32, #tpu.memory_space<vmem>>, vector<1x128xf32>,
    } else {
    }
    %c0_4 = arith.constant 0 : index
    %c0_5 = arith.constant 0 : index
    %7 = vector.load %arg3[%c0_4, %c0_5] : memref<1x128xf32, #tpu.memory_space<vmem>>, vector<1x128xf32>
    %cst_6 = arith.constant dense<0.000000e+00> : vector<128xf32>
    %8 = vector.multi_reduction <add>, %0, %cst_6 [0] : vector<128x128xf32> to vector<128xf32>
    %9 = vector.shape_cast %8 : vector<128xf32> to vector<1x128xf32>
    %10 = arith.addf %7, %9 : vector<1x128xf32>
    %c0_7 = arith.constant 0 : index
    %c0_8 = arith.constant 0 : index
    %11 = vector.load %arg3[%c0_7, %c0_8] : memref<1x128xf32, #tpu.memory_space<vmem>>, vector<1x128xf32>
    tpu.vector_store %arg3[%c0_7, %c0_8], %10 {strides = array<i32>} : memref<1x128xf32, #tpu.memory_space<vmem>>, vector<1x128xf32>,
    return
  }
  func.func @transform_0(%arg0: i32) -> (i32, i32) {
    %c0_i32 = arith.constant 0 : i32
    %c0_i32_0 = arith.constant 0 : i32
    return %arg0, %c0_i32 : i32, i32
  }
  func.func @transform_1(%arg0: i32) -> (i32, i32) {
    %c0_i32 = arith.constant 0 : i32
    %c0_i32_0 = arith.constant 0 : i32
    return %arg0, %c0_i32 : i32, i32
  }
  func.func @transform_2(%arg0: i32) -> (i32, i32) {
    %c0_i32 = arith.constant 0 : i32
    %c0_i32_0 = arith.constant 0 : i32
    %c0_i32_1 = arith.constant 0 : i32
    return %c0_i32, %c0_i32_0 : i32, i32
  }
}

module attributes {stable_mosaic.version = 11 : i64} {
  func.func @_hop_kernel(%arg0: i32, %arg1: i32, %arg2: memref<128x128xf32, #tpu.memory_space<vmem>>, %arg3: memref<128x128xf32, #tpu.memory_space<vmem>>, %arg4: memref<128x1xf32, #tpu.memory_space<vmem>>, %arg5: memref<1x128xf32, #tpu.memory_space<vmem>>, %arg6: memref<128x128xf32, #tpu.memory_space<vmem>>, %arg7: memref<128x128xf32, #tpu.memory_space<vmem>>) attributes {dimension_semantics = [#tpu.dimension_semantics<parallel>, #tpu.dimension_semantics<arbitrary>], iteration_bounds = array<i64: 1, 1>, scalar_prefetch = 0 : i64, scratch_operands = 1 : i64, tpu.core_type = #tpu.core_type<tc>, window_params = [{transform_indices = @transform_0, window_bounds = array<i64: 128, 128>}, {transform_indices = @transform_1, window_bounds = array<i64: 128, 128>}, {transform_indices = @transform_2, window_bounds = array<i64: 128, 1>}, {pipeline_mode = #tpu.pipeline_mode<synchronous>, transform_indices = @transform_3, window_bounds = array<i64: 1, 128>}, {transform_indices = @transform_4, window_bounds = array<i64: 128, 128>}]} {
    %c0_i32 = arith.constant 0 : i32
    %0 = arith.cmpi eq, %arg1, %c0_i32 : i32
    %1 = arith.extui %0 : i1 to i32
    %c0_i32_0 = arith.constant 0 : i32
    %2 = arith.cmpi ne, %1, %c0_i32_0 : i32
    scf.if %2 {
      %cst_10 = arith.constant 0.000000e+00 : f32
      %12 = vector.broadcast %cst_10 : f32 to vector<128x128xf32>
      %c0_11 = arith.constant 0 : index
      %c0_12 = arith.constant 0 : index
      %13 = vector.load %arg7[%c0_11, %c0_12] : memref<128x128xf32, #tpu.memory_space<vmem>>, vector<128x128xf32>
      tpu.vector_store %arg7[%c0_11, %c0_12], %12 {strides = array<i32>} : memref<128x128xf32, #tpu.memory_space<vmem>>, vector<128x128xf32>,
    } else {
    }
    %c0 = arith.constant 0 : index
    %c0_1 = arith.constant 0 : index
    %3 = vector.load %arg7[%c0, %c0_1] : memref<128x128xf32, #tpu.memory_space<vmem>>, vector<128x128xf32>
    %c0_2 = arith.constant 0 : index
    %c0_3 = arith.constant 0 : index
    %4 = vector.load %arg2[%c0_2, %c0_3] : memref<128x128xf32, #tpu.memory_space<vmem>>, vector<128x128xf32>
    %c0_4 = arith.constant 0 : index
    %c0_5 = arith.constant 0 : index
    %5 = vector.load %arg3[%c0_4, %c0_5] : memref<128x128xf32, #tpu.memory_space<vmem>>, vector<128x128xf32>
    %cst = arith.constant dense<0.000000e+00> : vector<128x128xf32>
    %6 = tpu.matmul %4, %5, %cst {dimension_numbers = #tpu.dot_dimension_numbers<[1], [0], [0], [1], [0, 0, 1, 1], [], []>} : vector<128x128xf32>, vector<128x128xf32>, vector<128x128xf32> -> vector<128x128xf32>
    %7 = arith.addf %3, %6 : vector<128x128xf32>
    %c0_6 = arith.constant 0 : index
    %c0_7 = arith.constant 0 : index
    %8 = vector.load %arg7[%c0_6, %c0_7] : memref<128x128xf32, #tpu.memory_space<vmem>>, vector<128x128xf32>
    tpu.vector_store %arg7[%c0_6, %c0_7], %7 {strides = array<i32>} : memref<128x128xf32, #tpu.memory_space<vmem>>, vector<128x128xf32>,
    %c0_i32_8 = arith.constant 0 : i32
    %9 = arith.cmpi eq, %arg1, %c0_i32_8 : i32
    %10 = arith.extui %9 : i1 to i32
    %c0_i32_9 = arith.constant 0 : i32
    %11 = arith.cmpi ne, %10, %c0_i32_9 : i32
    scf.if %11 {
      %c0_10 = arith.constant 0 : index
      %c0_11 = arith.constant 0 : index
      %12 = vector.load %arg4[%c0_10, %c0_11] : memref<128x1xf32, #tpu.memory_space<vmem>>, vector<128x1xf32>
      %c0_12 = arith.constant 0 : index
      %c0_13 = arith.constant 0 : index
      %13 = vector.load %arg7[%c0_12, %c0_13] : memref<128x128xf32, #tpu.memory_space<vmem>>, vector<128x128xf32>
      %14 = vector.broadcast %12 : vector<128x1xf32> to vector<128x128xf32>
      %15 = arith.mulf %14, %13 : vector<128x128xf32>
      %c0_14 = arith.constant 0 : index
      %c0_15 = arith.constant 0 : index
      %16 = vector.load %arg5[%c0_14, %c0_15] : memref<1x128xf32, #tpu.memory_space<vmem>>, vector<1x128xf32>
      %17 = vector.broadcast %16 : vector<1x128xf32> to vector<128x128xf32>
      %18 = arith.addf %15, %17 : vector<128x128xf32>
      %c0_16 = arith.constant 0 : index
      %c0_17 = arith.constant 0 : index
      %19 = vector.load %arg6[%c0_16, %c0_17] : memref<128x128xf32, #tpu.memory_space<vmem>>, vector<128x128xf32>
      tpu.vector_store %arg6[%c0_16, %c0_17], %18 {strides = array<i32>} : memref<128x128xf32, #tpu.memory_space<vmem>>, vector<128x128xf32>,
    } else {
    }
    return
  }
  func.func @transform_0(%arg0: i32, %arg1: i32) -> (i32, i32) {
    %c0_i32 = arith.constant 0 : i32
    return %arg0, %arg1 : i32, i32
  }
  func.func @transform_1(%arg0: i32, %arg1: i32) -> (i32, i32) {
    %c0_i32 = arith.constant 0 : i32
    %c0_i32_0 = arith.constant 0 : i32
    return %arg1, %c0_i32 : i32, i32
  }
  func.func @transform_2(%arg0: i32, %arg1: i32) -> (i32, i32) {
    %c0_i32 = arith.constant 0 : i32
    %c0_i32_0 = arith.constant 0 : i32
    return %arg0, %c0_i32 : i32, i32
  }
  func.func @transform_3(%arg0: i32, %arg1: i32) -> (i32, i32) {
    %c0_i32 = arith.constant 0 : i32
    %c0_i32_0 = arith.constant 0 : i32
    %c0_i32_1 = arith.constant 0 : i32
    return %c0_i32, %c0_i32_0 : i32, i32
  }
  func.func @transform_4(%arg0: i32, %arg1: i32) -> (i32, i32) {
    %c0_i32 = arith.constant 0 : i32
    %c0_i32_0 = arith.constant 0 : i32
    return %arg0, %c0_i32 : i32, i32
  }
}

</mosaic_0001>

<llo_original>
// kernel: sgconv_forward.4
$region0: #{sgconv_forward.4}
  #allocation0 [shape = 'u32[]', space=smem, size = 0x4, offset = 0x4, fixed_abs, tag = 'smem constant byte address 0x4 - core index']
  #allocation1 [shape = 'u32[144,128]{1,0:T(1,128)}', space=vmem, size = 0x12000, scoped, tag = 'internal scratch']
  %s0 = inlined_call_operand.vmem [shape: f32[128,128], index: 0, kind: input, shape index: {}]
  %s1 = inlined_call_operand.vmem [shape: f32[128,1], index: 1, kind: output, shape index: {0}]
  %s2 = inlined_call_operand.vmem [shape: f32[1,128], index: 2, kind: output, shape index: {1}]
  %3 = xla_tuple %s1, %s2
  %s4 = sld [smem:[#allocation0]]
  $region26: #{sgconv_forward.4} parent=0
    _
  %s6 = ssub.s32 1, %s4
  %s7 = scalar_select 0, %s6, %s4
  // Predicated region
  $region2: #{sgconv_forward.4} parent=0 // pred_check
    _
  $region3: #{sgconv_forward.4} parent=0 // pred_check_branch
    %9 = sbr.rel (0) target = $region5
  $region4: #{sgconv_forward.4} parent=0 // pred_region
    _
  $region5: #{sgconv_forward.4} parent=0 // pred_fallthru
    _
  %v10 = vld [vmem:[%s0] sm:$0xff]
  %v11 = vld [vmem:[%s0 + $0x8] sm:$0xff]
  %v12 = vld [vmem:[%s0 + $0x10] sm:$0xff]
  %v13 = vld [vmem:[%s0 + $0x18] sm:$0xff]
  %v14 = vld [vmem:[%s0 + $0x20] sm:$0xff]
  %v15 = vld [vmem:[%s0 + $0x28] sm:$0xff]
  %v16 = vld [vmem:[%s0 + $0x30] sm:$0xff]
  %v17 = vld [vmem:[%s0 + $0x38] sm:$0xff]
  %v18 = vld [vmem:[%s0 + $0x40] sm:$0xff]
  %v19 = vld [vmem:[%s0 + $0x48] sm:$0xff]
  %v20 = vld [vmem:[%s0 + $0x50] sm:$0xff]
  %v21 = vld [vmem:[%s0 + $0x58] sm:$0xff]
  %v22 = vld [vmem:[%s0 + $0x60] sm:$0xff]
  %v23 = vld [vmem:[%s0 + $0x68] sm:$0xff]
  %v24 = vld [vmem:[%s0 + $0x70] sm:$0xff]
  %v25 = vld [vmem:[%s0 + $0x78] sm:$0xff]
  %26 = vadd.xlane.f32.xlu0 %v10
  %v27 = vpop.xlane.xlu0 %26
  %28 = vadd.xlane.f32.xlu0 %v11
  %v29 = vpop.xlane.xlu0 %28
  %30 = vadd.xlane.f32.xlu0 %v12
  %v31 = vpop.xlane.xlu0 %30
  %32 = vadd.xlane.f32.xlu0 %v13
  %v33 = vpop.xlane.xlu0 %32
  %34 = vadd.xlane.f32.xlu0 %v14
  %v35 = vpop.xlane.xlu0 %34
  %36 = vadd.xlane.f32.xlu0 %v15
  %v37 = vpop.xlane.xlu0 %36
  %38 = vadd.xlane.f32.xlu0 %v16
  %v39 = vpop.xlane.xlu0 %38
  %40 = vadd.xlane.f32.xlu0 %v17
  %v41 = vpop.xlane.xlu0 %40
  %42 = vadd.xlane.f32.xlu0 %v18
  %v43 = vpop.xlane.xlu0 %42
  %44 = vadd.xlane.f32.xlu0 %v19
  %v45 = vpop.xlane.xlu0 %44
  %46 = vadd.xlane.f32.xlu0 %v20
  %v47 = vpop.xlane.xlu0 %46
  %48 = vadd.xlane.f32.xlu0 %v21
  %v49 = vpop.xlane.xlu0 %48
  %50 = vadd.xlane.f32.xlu0 %v22
  %v51 = vpop.xlane.xlu0 %50
  %52 = vadd.xlane.f32.xlu0 %v23
  %v53 = vpop.xlane.xlu0 %52
  %54 = vadd.xlane.f32.xlu0 %v24
  %v55 = vpop.xlane.xlu0 %54
  %56 = vadd.xlane.f32.xlu0 %v25
  %v57 = vpop.xlane.xlu0 %56
  %vm58 = vcmask 7168
  %59 = vst.msk [vmem:[%s1] sm:$0xff] %vm58, %v27
  %60 = vst.msk [vmem:[%s1 + $0x8] sm:$0xff] %vm58, %v29
  %61 = vst.msk [vmem:[%s1 + $0x10] sm:$0xff] %vm58, %v31
  %62 = vst.msk [vmem:[%s1 + $0x18] sm:$0xff] %vm58, %v33
  %63 = vst.msk [vmem:[%s1 + $0x20] sm:$0xff] %vm58, %v35
  %64 = vst.msk [vmem:[%s1 + $0x28] sm:$0xff] %vm58, %v37
  %65 = vst.msk [vmem:[%s1 + $0x30] sm:$0xff] %vm58, %v39
  %66 = vst.msk [vmem:[%s1 + $0x38] sm:$0xff] %vm58, %v41
  %67 = vst.msk [vmem:[%s1 + $0x40] sm:$0xff] %vm58, %v43
  %68 = vst.msk [vmem:[%s1 + $0x48] sm:$0xff] %vm58, %v45
  %69 = vst.msk [vmem:[%s1 + $0x50] sm:$0xff] %vm58, %v47
  %70 = vst.msk [vmem:[%s1 + $0x58] sm:$0xff] %vm58, %v49
  %71 = vst.msk [vmem:[%s1 + $0x60] sm:$0xff] %vm58, %v51
  %72 = vst.msk [vmem:[%s1 + $0x68] sm:$0xff] %vm58, %v53
  %73 = vst.msk [vmem:[%s1 + $0x70] sm:$0xff] %vm58, %v55
  %74 = vst.msk [vmem:[%s1 + $0x78] sm:$0xff] %vm58, %v57
  %p75 = scmp.eq.s32.totalorder 0, 0
  // Predicated region
  $region6: #{sgconv_forward.4} parent=0 // pred_check
    %p76 = pneg %p75
  $region7: #{sgconv_forward.4} parent=0 // pred_check_branch
    %78 = sbr.rel (%p76) target = $region9
  $region8: #{sgconv_forward.4} parent=0 // pred_region
    %79 = vst [vmem:[%s2] sm:$0x1] 0.0
  $region9: #{sgconv_forward.4} parent=0 // pred_fallthru
    _
  %v80 = vld [vmem:[%s2] sm:$0x1]
  %v81 = vadd.f32 %v10, %v11
  %v82 = vadd.f32 %v81, %v12
  %v83 = vadd.f32 %v82, %v13
  %v84 = vadd.f32 %v83, %v14
  %v85 = vadd.f32 %v84, %v15
  %v86 = vadd.f32 %v85, %v16
  %v87 = vadd.f32 %v86, %v17
  %v88 = vadd.f32 %v87, %v18
  %v89 = vadd.f32 %v88, %v19
  %v90 = vadd.f32 %v89, %v20
  %v91 = vadd.f32 %v90, %v21
  %v92 = vadd.f32 %v91, %v22
  %v93 = vadd.f32 %v92, %v23
  %v94 = vadd.f32 %v93, %v24
  %v95 = vadd.f32 %v94, %v25
  %v96 = vrot.slane %v95, 4
  %v97 = vadd.f32 %v95, %v96
  %v98 = vrot.slane %v97, 2
  %v99 = vadd.f32 %v97, %v98
  %v100 = vrot.slane %v99, 1
  %v101 = vadd.f32 %v99, %v100
  %v102 = vadd.f32 %v80, %v101
  %103 = vst [vmem:[%s2] sm:$0x1] %v102
  // Predicated region
  $region10: #{sgconv_forward.4} parent=0 // pred_check
    _
  $region11: #{sgconv_forward.4} parent=0 // pred_check_branch
    %105 = sbr.rel (0) target = $region13
  $region12: #{sgconv_forward.4} parent=0 // pred_region
    _
  $region13: #{sgconv_forward.4} parent=0 // pred_fallthru
    _
  // Predicated region
  $region14: #{sgconv_forward.4} parent=0 // pred_check
    _
  $region15: #{sgconv_forward.4} parent=0 // pred_check_branch
    %107 = sbr.rel (0) target = $region17
  $region16: #{sgconv_forward.4} parent=0 // pred_region
    _
  $region17: #{sgconv_forward.4} parent=0 // pred_fallthru
    _
  // Predicated region
  $region18: #{sgconv_forward.4} parent=0 // pred_check
    _
  $region19: #{sgconv_forward.4} parent=0 // pred_check_branch
    %109 = sbr.rel (0) target = $region21
  $region20: #{sgconv_forward.4} parent=0 // pred_region
    _
  $region21: #{sgconv_forward.4} parent=0 // pred_fallthru
    _
  // Predicated region
  $region22: #{sgconv_forward.4} parent=0 // pred_check
    _
  $region23: #{sgconv_forward.4} parent=0 // pred_check_branch
    %111 = sbr.rel (0) target = $region25
  $region24: #{sgconv_forward.4} parent=0 // pred_region
    _
  $region25: #{sgconv_forward.4} parent=0 // pred_fallthru
    _

// kernel: sgconv_forward.5
$region0: #{sgconv_forward.5}
  #allocation0 [shape = 'u32[]', space=smem, size = 0x4, offset = 0x4, fixed_abs, tag = 'smem constant byte address 0x4 - core index']
  #allocation1 [shape = 'u32[144,128]{1,0:T(1,128)}', space=vmem, size = 0x12000, scoped, tag = 'internal scratch']
  %s0 = inlined_call_operand.vmem [shape: f32[128,64], index: 0, kind: input, shape index: {}]
  %s1 = inlined_call_operand.vmem [shape: f32[64,128], index: 1, kind: input, shape index: {}]
  %s2 = inlined_call_operand.vmem [shape: f32[128,1], index: 2, kind: input, shape index: {}]
  %s3 = inlined_call_operand.vmem [shape: f32[1,128], index: 3, kind: input, shape index: {}]
  %s4 = inlined_call_operand.vmem [shape: f32[128,128], index: 4, kind: output, shape index: {}]
  %s5 = sld [smem:[#allocation0]]
  $region26: #{sgconv_forward.5} parent=0
    _
  %s7 = ssub.s32 1, %s5
  %s8 = scalar_select 0, %s7, %s5
  // Predicated region
  $region2: #{sgconv_forward.5} parent=0 // pred_check
    _
  $region3: #{sgconv_forward.5} parent=0 // pred_check_branch
    %10 = sbr.rel (0) target = $region5
  $region4: #{sgconv_forward.5} parent=0 // pred_region
    _
  $region5: #{sgconv_forward.5} parent=0 // pred_fallthru
    _
  // Predicated region
  $region6: #{sgconv_forward.5} parent=0 // pred_check
    _
  $region7: #{sgconv_forward.5} parent=0 // pred_check_branch
    %12 = sbr.rel (0) target = $region9
  $region8: #{sgconv_forward.5} parent=0 // pred_region
    _
  $region9: #{sgconv_forward.5} parent=0 // pred_fallthru
    _
  // Predicated region
  $region10: #{sgconv_forward.5} parent=0 // pred_check
    _
  $region11: #{sgconv_forward.5} parent=0 // pred_check_branch
    %14 = sbr.rel (0) target = $region13
  $region12: #{sgconv_forward.5} parent=0 // pred_region
    _
  $region13: #{sgconv_forward.5} parent=0 // pred_fallthru
    _
  // Predicated region
  $region14: #{sgconv_forward.5} parent=0 // pred_check
    _
  $region15: #{sgconv_forward.5} parent=0 // pred_check_branch
    %16 = sbr.rel (0) target = $region17
  $region16: #{sgconv_forward.5} parent=0 // pred_region
    _
  $region17: #{sgconv_forward.5} parent=0 // pred_fallthru
    _
  %v17 = vld [vmem:[%s0] sm:$0xff]
  %v18 = vld [vmem:[%s0 + $0x8] sm:$0xff]
  %v19 = vld [vmem:[%s0 + $0x10] sm:$0xff]
  %v20 = vld [vmem:[%s0 + $0x18] sm:$0xff]
  %v21 = vld [vmem:[%s0 + $0x20] sm:$0xff]
  %v22 = vld [vmem:[%s0 + $0x28] sm:$0xff]
  %v23 = vld [vmem:[%s0 + $0x30] sm:$0xff]
  %v24 = vld [vmem:[%s0 + $0x38] sm:$0xff]
  %v25 = vld [vmem:[%s0 + $0x40] sm:$0xff]
  %v26 = vld [vmem:[%s0 + $0x48] sm:$0xff]
  %v27 = vld [vmem:[%s0 + $0x50] sm:$0xff]
  %v28 = vld [vmem:[%s0 + $0x58] sm:$0xff]
  %v29 = vld [vmem:[%s0 + $0x60] sm:$0xff]
  %v30 = vld [vmem:[%s0 + $0x68] sm:$0xff]
  %v31 = vld [vmem:[%s0 + $0x70] sm:$0xff]
  %v32 = vld [vmem:[%s0 + $0x78] sm:$0xff]
  %v33 = vld [vmem:[%s1] sm:$0xff]
  %v34 = vld [vmem:[%s1 + $0x8] sm:$0xff]
  %v35 = vld [vmem:[%s1 + $0x10] sm:$0xff]
  %v36 = vld [vmem:[%s1 + $0x18] sm:$0xff]
  %v37 = vld [vmem:[%s1 + $0x20] sm:$0xff]
  %v38 = vld [vmem:[%s1 + $0x28] sm:$0xff]
  %v39 = vld [vmem:[%s1 + $0x30] sm:$0xff]
  %v40 = vld [vmem:[%s1 + $0x38] sm:$0xff]
  %vm41 = vcmask 523264
  %v43 = vsel %vm41, %v17, 0
  %v46 = vsel %vm41, %v18, 0
  %v49 = vsel %vm41, %v19, 0
  %v52 = vsel %vm41, %v20, 0
  %v55 = vsel %vm41, %v21, 0
  %v58 = vsel %vm41, %v22, 0
  %v61 = vsel %vm41, %v23, 0
  %v64 = vsel %vm41, %v24, 0
  %v67 = vsel %vm41, %v25, 0
  %v70 = vsel %vm41, %v26, 0
  %v73 = vsel %vm41, %v27, 0
  %v76 = vsel %vm41, %v28, 0
  %v79 = vsel %vm41, %v29, 0
  %v82 = vsel %vm41, %v30, 0
  %v85 = vsel %vm41, %v31, 0
  %v88 = vsel %vm41, %v32, 0
  %90 = vmatprep.subr.mxu0 0.0
  %91 = vmatpush1.msra.mxu0 %v33
  %92 = vmatprep.subr.mxu0 0.0
  %93 = vmatpush1.msra.mxu0 %v34
  %94 = vmatprep.subr.mxu0 0.0
  %95 = vmatpush1.msra.mxu0 %v35
  %96 = vmatprep.subr.mxu0 0.0
  %97 = vmatpush1.msra.mxu0 %v36
  %98 = vmatprep.subr.mxu0 0.0
  %99 = vmatpush1.msra.mxu0 %v37
  %100 = vmatprep.subr.mxu0 0.0
  %101 = vmatpush1.msra.mxu0 %v38
  %102 = vmatprep.subr.mxu0 0.0
  %103 = vmatpush1.msra.mxu0 %v39
  %104 = vmatprep.subr.mxu0 0.0
  %105 = vmatpush1.msra.mxu0 %v40
  %106 = vmatprep.subr.mxu0 0.0
  %107 = vmatpush1.msra.mxu0 0.0
  %108 = vmatprep.subr.mxu0 0.0
  %109 = vmatpush1.msra.mxu0 0.0
  %110 = vmatprep.subr.mxu0 0.0
  %111 = vmatpush1.msra.mxu0 0.0
  %112 = vmatprep.subr.mxu0 0.0
  %113 = vmatpush1.msra.mxu0 0.0
  %114 = vmatprep.subr.mxu0 0.0
  %115 = vmatpush1.msra.mxu0 0.0
  %116 = vmatprep.subr.mxu0 0.0
  %117 = vmatpush1.msra.mxu0 0.0
  %118 = vmatprep.subr.mxu0 0.0
  %119 = vmatpush1.msra.mxu0 0.0
  %120 = vmatprep.subr.mxu0 0.0
  %121 = vmatpush1.msra.mxu0 0.0
  %122 = vmatprep.subr.mxu0 0.0
  %123 = vmatpush1.msra.mxu0 0.0
  %124 = vmatprep.subr.mxu0 0.0
  %125 = vmatpush1.msra.mxu0 0.0
  %126 = vmatprep.subr.mxu0 0.0
  %127 = vmatpush1.msra.mxu0 0.0
  %128 = vmatprep.subr.mxu0 0.0
  %129 = vmatpush1.msra.mxu0 0.0
  %130 = vmatprep.subr.mxu0 0.0
  %131 = vmatpush1.msra.mxu0 0.0
  %132 = vmatprep.subr.mxu0 0.0
  %133 = vmatpush1.msra.mxu0 0.0
  %134 = vmatprep.subr.mxu0 0.0
  %135 = vmatpush1.msra.mxu0 0.0
  %136 = vmatprep.subr.mxu0 0.0
  %137 = vmatpush1.msra.mxu0 0.0
  %138 = vmatprep.subr.mxu0 0.0
  %139 = vmatpush1.msra.mxu0 0.0
  %140 = vmatprep.subr.mxu0 0.0
  %141 = vmatpush1.msra.mxu0 0.0
  %142 = vmatprep.subr.mxu0 0.0
  %143 = vmatpush1.msra.mxu0 0.0
  %144 = vmatprep.subr.mxu0 0.0
  %145 = vmatpush1.msra.mxu0 0.0
  %146 = vmatprep.subr.mxu0 0.0
  %147 = vmatpush1.msra.mxu0 0.0
  %148 = vmatprep.subr.mxu0 0.0
  %149 = vmatpush1.msra.mxu0 0.0
  %150 = vmatprep.subr.mxu0 0.0
  %151 = vmatpush1.msra.mxu0 0.0
  %152 = vmatprep.subr.mxu0 0.0
  %153 = vmatpush1.msra.mxu0 0.0
  %154 = vmatprep.mubr.f32.mxu0 0.0
  %155 = vmatmul.mubr.f32.gmra.mrb[0].mxu0 %v43
  %v156 = vpop.f32.mrb[0].mxu0
  %v157 = vadd.f32 0.0, %v156
  %v158 = vpop.f32.mrb[0].mxu0
  %159 = vmatprep.mubr.f32.mxu0 0.0
  %160 = vmatmul.mubr.f32.gmra.mrb[0].mxu0 %v46
  %v161 = vpop.f32.mrb[0].mxu0
  %v162 = vadd.f32 0.0, %v161
  %v163 = vpop.f32.mrb[0].mxu0
  %164 = vmatprep.mubr.f32.mxu0 0.0
  %165 = vmatmul.mubr.f32.gmra.mrb[0].mxu0 %v49
  %v166 = vpop.f32.mrb[0].mxu0
  %v167 = vadd.f32 0.0, %v166
  %v168 = vpop.f32.mrb[0].mxu0
  %169 = vmatprep.mubr.f32.mxu0 0.0
  %170 = vmatmul.mubr.f32.gmra.mrb[0].mxu0 %v52
  %v171 = vpop.f32.mrb[0].mxu0
  %v172 = vadd.f32 0.0, %v171
  %v173 = vpop.f32.mrb[0].mxu0
  %174 = vmatprep.mubr.f32.mxu0 0.0
  %175 = vmatmul.mubr.f32.gmra.mrb[0].mxu0 %v55
  %v176 = vpop.f32.mrb[0].mxu0
  %v177 = vadd.f32 0.0, %v176
  %v178 = vpop.f32.mrb[0].mxu0
  %179 = vmatprep.mubr.f32.mxu0 0.0
  %180 = vmatmul.mubr.f32.gmra.mrb[0].mxu0 %v58
  %v181 = vpop.f32.mrb[0].mxu0
  %v182 = vadd.f32 0.0, %v181
  %v183 = vpop.f32.mrb[0].mxu0
  %184 = vmatprep.mubr.f32.mxu0 0.0
  %185 = vmatmul.mubr.f32.gmra.mrb[0].mxu0 %v61
  %v186 = vpop.f32.mrb[0].mxu0
  %v187 = vadd.f32 0.0, %v186
  %v188 = vpop.f32.mrb[0].mxu0
  %189 = vmatprep.mubr.f32.mxu0 0.0
  %190 = vmatmul.mubr.f32.gmra.mrb[0].mxu0 %v64
  %v191 = vpop.f32.mrb[0].mxu0
  %v192 = vadd.f32 0.0, %v191
  %v193 = vpop.f32.mrb[0].mxu0
  %194 = vmatprep.mubr.f32.mxu0 0.0
  %195 = vmatmul.mubr.f32.gmra.mrb[0].mxu0 %v67
  %v196 = vpop.f32.mrb[0].mxu0
  %v197 = vadd.f32 0.0, %v196
  %v198 = vpop.f32.mrb[0].mxu0
  %199 = vmatprep.mubr.f32.mxu0 0.0
  %200 = vmatmul.mubr.f32.gmra.mrb[0].mxu0 %v70
  %v201 = vpop.f32.mrb[0].mxu0
  %v202 = vadd.f32 0.0, %v201
  %v203 = vpop.f32.mrb[0].mxu0
  %204 = vmatprep.mubr.f32.mxu0 0.0
  %205 = vmatmul.mubr.f32.gmra.mrb[0].mxu0 %v73
  %v206 = vpop.f32.mrb[0].mxu0
  %v207 = vadd.f32 0.0, %v206
  %v208 = vpop.f32.mrb[0].mxu0
  %209 = vmatprep.mubr.f32.mxu0 0.0
  %210 = vmatmul.mubr.f32.gmra.mrb[0].mxu0 %v76
  %v211 = vpop.f32.mrb[0].mxu0
  %v212 = vadd.f32 0.0, %v211
  %v213 = vpop.f32.mrb[0].mxu0
  %214 = vmatprep.mubr.f32.mxu0 0.0
  %215 = vmatmul.mubr.f32.gmra.mrb[0].mxu0 %v79
  %v216 = vpop.f32.mrb[0].mxu0
  %v217 = vadd.f32 0.0, %v216
  %v218 = vpop.f32.mrb[0].mxu0
  %219 = vmatprep.mubr.f32.mxu0 0.0
  %220 = vmatmul.mubr.f32.gmra.mrb[0].mxu0 %v82
  %v221 = vpop.f32.mrb[0].mxu0
  %v222 = vadd.f32 0.0, %v221
  %v223 = vpop.f32.mrb[0].mxu0
  %224 = vmatprep.mubr.f32.mxu0 0.0
  %225 = vmatmul.mubr.f32.gmra.mrb[0].mxu0 %v85
  %v226 = vpop.f32.mrb[0].mxu0
  %v227 = vadd.f32 0.0, %v226
  %v228 = vpop.f32.mrb[0].mxu0
  %229 = vmatprep.mubr.f32.mxu0 0.0
  %230 = vmatmul.mubr.f32.gmra.mrb[0].mxu0 %v88
  %v231 = vpop.f32.mrb[0].mxu0
  %v232 = vadd.f32 0.0, %v231
  %v233 = vpop.f32.mrb[0].mxu0
  %234 = vdwg.mxu0
  %v235 = vld [vmem:[%s2] sm:$0xff]
  %v236 = vld [vmem:[%s2 + $0x8] sm:$0xff]
  %v237 = vld [vmem:[%s2 + $0x10] sm:$0xff]
  %v238 = vld [vmem:[%s2 + $0x18] sm:$0xff]
  %v239 = vld [vmem:[%s2 + $0x20] sm:$0xff]
  %v240 = vld [vmem:[%s2 + $0x28] sm:$0xff]
  %v241 = vld [vmem:[%s2 + $0x30] sm:$0xff]
  %v242 = vld [vmem:[%s2 + $0x38] sm:$0xff]
  %v243 = vld [vmem:[%s2 + $0x40] sm:$0xff]
  %v244 = vld [vmem:[%s2 + $0x48] sm:$0xff]
  %v245 = vld [vmem:[%s2 + $0x50] sm:$0xff]
  %v246 = vld [vmem:[%s2 + $0x58] sm:$0xff]
  %v247 = vld [vmem:[%s2 + $0x60] sm:$0xff]
  %v248 = vld [vmem:[%s2 + $0x68] sm:$0xff]
  %v249 = vld [vmem:[%s2 + $0x70] sm:$0xff]
  %v250 = vld [vmem:[%s2 + $0x78] sm:$0xff]
  %252 = vset.pattern.permute.xlu0 0
  %253 = vperm.xlu0 %252, %v235
  %v254 = vpop.permute.xlu0 %253
  %257 = vset.pattern.permute.xlu0 0
  %258 = vperm.xlu0 %257, %v236
  %v259 = vpop.permute.xlu0 %258
  %262 = vset.pattern.permute.xlu0 0
  %263 = vperm.xlu0 %262, %v237
  %v264 = vpop.permute.xlu0 %263
  %267 = vset.pattern.permute.xlu0 0
  %268 = vperm.xlu0 %267, %v238
  %v269 = vpop.permute.xlu0 %268
  %272 = vset.pattern.permute.xlu0 0
  %273 = vperm.xlu0 %272, %v239
  %v274 = vpop.permute.xlu0 %273
  %277 = vset.pattern.permute.xlu0 0
  %278 = vperm.xlu0 %277, %v240
  %v279 = vpop.permute.xlu0 %278
  %282 = vset.pattern.permute.xlu0 0
  %283 = vperm.xlu0 %282, %v241
  %v284 = vpop.permute.xlu0 %283
  %287 = vset.pattern.permute.xlu0 0
  %288 = vperm.xlu0 %287, %v242
  %v289 = vpop.permute.xlu0 %288
  %292 = vset.pattern.permute.xlu0 0
  %293 = vperm.xlu0 %292, %v243
  %v294 = vpop.permute.xlu0 %293
  %297 = vset.pattern.permute.xlu0 0
  %298 = vperm.xlu0 %297, %v244
  %v299 = vpop.permute.xlu0 %298
  %302 = vset.pattern.permute.xlu0 0
  %303 = vperm.xlu0 %302, %v245
  %v304 = vpop.permute.xlu0 %303
  %307 = vset.pattern.permute.xlu0 0
  %308 = vperm.xlu0 %307, %v246
  %v309 = vpop.permute.xlu0 %308
  %312 = vset.pattern.permute.xlu0 0
  %313 = vperm.xlu0 %312, %v247
  %v314 = vpop.permute.xlu0 %313
  %317 = vset.pattern.permute.xlu0 0
  %318 = vperm.xlu0 %317, %v248
  %v319 = vpop.permute.xlu0 %318
  %322 = vset.pattern.permute.xlu0 0
  %323 = vperm.xlu0 %322, %v249
  %v324 = vpop.permute.xlu0 %323
  %327 = vset.pattern.permute.xlu0 0
  %328 = vperm.xlu0 %327, %v250
  %v329 = vpop.permute.xlu0 %328
  %v331 = vmul.f32 %v254, %v157
  %v332 = vmul.f32 %v259, %v162
  %v333 = vmul.f32 %v264, %v167
  %v334 = vmul.f32 %v269, %v172
  %v335 = vmul.f32 %v274, %v177
  %v336 = vmul.f32 %v279, %v182
  %v337 = vmul.f32 %v284, %v187
  %v338 = vmul.f32 %v289, %v192
  %v339 = vmul.f32 %v294, %v197
  %v340 = vmul.f32 %v299, %v202
  %v341 = vmul.f32 %v304, %v207
  %v342 = vmul.f32 %v309, %v212
  %v343 = vmul.f32 %v314, %v217
  %v344 = vmul.f32 %v319, %v222
  %v345 = vmul.f32 %v324, %v227
  %v346 = vmul.f32 %v329, %v232
  %347 = vst [vmem:[%s4] sm:$0xff] %v331
  %348 = vst [vmem:[%s4 + $0x8] sm:$0xff] %v332
  %349 = vst [vmem:[%s4 + $0x10] sm:$0xff] %v333
  %350 = vst [vmem:[%s4 + $0x18] sm:$0xff] %v334
  %351 = vst [vmem:[%s4 + $0x20] sm:$0xff] %v335
  %352 = vst [vmem:[%s4 + $0x28] sm:$0xff] %v336
  %353 = vst [vmem:[%s4 + $0x30] sm:$0xff] %v337
  %354 = vst [vmem:[%s4 + $0x38] sm:$0xff] %v338
  %355 = vst [vmem:[%s4 + $0x40] sm:$0xff] %v339
  %356 = vst [vmem:[%s4 + $0x48] sm:$0xff] %v340
  %357 = vst [vmem:[%s4 + $0x50] sm:$0xff] %v341
  %358 = vst [vmem:[%s4 + $0x58] sm:$0xff] %v342
  %359 = vst [vmem:[%s4 + $0x60] sm:$0xff] %v343
  %360 = vst [vmem:[%s4 + $0x68] sm:$0xff] %v344
  %361 = vst [vmem:[%s4 + $0x70] sm:$0xff] %v345
  %362 = vst [vmem:[%s4 + $0x78] sm:$0xff] %v346
  // Predicated region
  $region18: #{sgconv_forward.5} parent=0 // pred_check
    _
  $region19: #{sgconv_forward.5} parent=0 // pred_check_branch
    %364 = sbr.rel (0) target = $region21
  $region20: #{sgconv_forward.5} parent=0 // pred_region
    _
  $region21: #{sgconv_forward.5} parent=0 // pred_fallthru
    _
  // Predicated region
  $region22: #{sgconv_forward.5} parent=0 // pred_check
    _
  $region23: #{sgconv_forward.5} parent=0 // pred_check_branch
    %366 = sbr.rel (0) target = $region25
  $region24: #{sgconv_forward.5} parent=0 // pred_region
    _
  $region25: #{sgconv_forward.5} parent=0 // pred_fallthru
    _

// kernel: sgconv_forward.6
$region0: #{sgconv_forward.6}
  #allocation0 [shape = 'u32[]', space=smem, size = 0x4, offset = 0x4, fixed_abs, tag = 'smem constant byte address 0x4 - core index']
  #allocation1 [shape = 'u32[144,128]{1,0:T(1,128)}', space=vmem, size = 0x12000, scoped, tag = 'internal scratch']
  #allocation2 [shape = 'f32[128,128]{1,0:T(8,128)}', space=vmem, size = 0x10000, scoped, tag = 'scratch operand']
  %s0 = inlined_call_operand.vmem [shape: f32[128,128], index: 0, kind: input, shape index: {}]
  %s1 = inlined_call_operand.vmem [shape: f32[128,128], index: 1, kind: input, shape index: {}]
  %s2 = inlined_call_operand.vmem [shape: f32[128,1], index: 2, kind: input, shape index: {}]
  %s3 = inlined_call_operand.vmem [shape: f32[128,128], index: 3, kind: output, shape index: {}]
  %s4 = sld [smem:[#allocation0]]
  $region30: #{sgconv_forward.6} parent=0
    _
  %s6 = ssub.s32 1, %s4
  %s7 = scalar_select 0, %s6, %s4
  // Predicated region
  $region2: #{sgconv_forward.6} parent=0 // pred_check
    _
  $region3: #{sgconv_forward.6} parent=0 // pred_check_branch
    %9 = sbr.rel (0) target = $region5
  $region4: #{sgconv_forward.6} parent=0 // pred_region
    _
  $region5: #{sgconv_forward.6} parent=0 // pred_fallthru
    _
  // Predicated region
  $region6: #{sgconv_forward.6} parent=0 // pred_check
    _
  $region7: #{sgconv_forward.6} parent=0 // pred_check_branch
    %11 = sbr.rel (0) target = $region9
  $region8: #{sgconv_forward.6} parent=0 // pred_region
    _
  $region9: #{sgconv_forward.6} parent=0 // pred_fallthru
    _
  // Predicated region
  $region10: #{sgconv_forward.6} parent=0 // pred_check
    _
  $region11: #{sgconv_forward.6} parent=0 // pred_check_branch
    %13 = sbr.rel (0) target = $region13
  $region12: #{sgconv_forward.6} parent=0 // pred_region
    _
  $region13: #{sgconv_forward.6} parent=0 // pred_fallthru
    _
  %p14 = scmp.eq.s32.totalorder 0, 0
  // Predicated region
  $region14: #{sgconv_forward.6} parent=0 // pred_check
    %p15 = pneg %p14
  $region15: #{sgconv_forward.6} parent=0 // pred_check_branch
    %17 = sbr.rel (%p15) target = $region17
  $region16: #{sgconv_forward.6} parent=0 // pred_region
    %18 = vst [vmem:[#allocation2] sm:$0xff] 0.0
    %19 = vst [vmem:[#allocation2 + $0x8] sm:$0xff] 0.0
    %20 = vst [vmem:[#allocation2 + $0x10] sm:$0xff] 0.0
    %21 = vst [vmem:[#allocation2 + $0x18] sm:$0xff] 0.0
    %22 = vst [vmem:[#allocation2 + $0x20] sm:$0xff] 0.0
    %23 = vst [vmem:[#allocation2 + $0x28] sm:$0xff] 0.0
    %24 = vst [vmem:[#allocation2 + $0x30] sm:$0xff] 0.0
    %25 = vst [vmem:[#allocation2 + $0x38] sm:$0xff] 0.0
    %26 = vst [vmem:[#allocation2 + $0x40] sm:$0xff] 0.0
    %27 = vst [vmem:[#allocation2 + $0x48] sm:$0xff] 0.0
    %28 = vst [vmem:[#allocation2 + $0x50] sm:$0xff] 0.0
    %29 = vst [vmem:[#allocation2 + $0x58] sm:$0xff] 0.0
    %30 = vst [vmem:[#allocation2 + $0x60] sm:$0xff] 0.0
    %31 = vst [vmem:[#allocation2 + $0x68] sm:$0xff] 0.0
    %32 = vst [vmem:[#allocation2 + $0x70] sm:$0xff] 0.0
    %33 = vst [vmem:[#allocation2 + $0x78] sm:$0xff] 0.0
  $region17: #{sgconv_forward.6} parent=0 // pred_fallthru
    _
  %v34 = vld [vmem:[#allocation2] sm:$0xff]
  %v35 = vld [vmem:[#allocation2 + $0x8] sm:$0xff]
  %v36 = vld [vmem:[#allocation2 + $0x10] sm:$0xff]
  %v37 = vld [vmem:[#allocation2 + $0x18] sm:$0xff]
  %v38 = vld [vmem:[#allocation2 + $0x20] sm:$0xff]
  %v39 = vld [vmem:[#allocation2 + $0x28] sm:$0xff]
  %v40 = vld [vmem:[#allocation2 + $0x30] sm:$0xff]
  %v41 = vld [vmem:[#allocation2 + $0x38] sm:$0xff]
  %v42 = vld [vmem:[#allocation2 + $0x40] sm:$0xff]
  %v43 = vld [vmem:[#allocation2 + $0x48] sm:$0xff]
  %v44 = vld [vmem:[#allocation2 + $0x50] sm:$0xff]
  %v45 = vld [vmem:[#allocation2 + $0x58] sm:$0xff]
  %v46 = vld [vmem:[#allocation2 + $0x60] sm:$0xff]
  %v47 = vld [vmem:[#allocation2 + $0x68] sm:$0xff]
  %v48 = vld [vmem:[#allocation2 + $0x70] sm:$0xff]
  %v49 = vld [vmem:[#allocation2 + $0x78] sm:$0xff]
  %v50 = vld [vmem:[%s0] sm:$0xff]
  %v51 = vld [vmem:[%s0 + $0x8] sm:$0xff]
  %v52 = vld [vmem:[%s0 + $0x10] sm:$0xff]
  %v53 = vld [vmem:[%s0 + $0x18] sm:$0xff]
  %v54 = vld [vmem:[%s0 + $0x20] sm:$0xff]
  %v55 = vld [vmem:[%s0 + $0x28] sm:$0xff]
  %v56 = vld [vmem:[%s0 + $0x30] sm:$0xff]
  %v57 = vld [vmem:[%s0 + $0x38] sm:$0xff]
  %v58 = vld [vmem:[%s0 + $0x40] sm:$0xff]
  %v59 = vld [vmem:[%s0 + $0x48] sm:$0xff]
  %v60 = vld [vmem:[%s0 + $0x50] sm:$0xff]
  %v61 = vld [vmem:[%s0 + $0x58] sm:$0xff]
  %v62 = vld [vmem:[%s0 + $0x60] sm:$0xff]
  %v63 = vld [vmem:[%s0 + $0x68] sm:$0xff]
  %v64 = vld [vmem:[%s0 + $0x70] sm:$0xff]
  %v65 = vld [vmem:[%s0 + $0x78] sm:$0xff]
  %v66 = vld [vmem:[%s1] sm:$0xff]
  %v67 = vld [vmem:[%s1 + $0x8] sm:$0xff]
  %v68 = vld [vmem:[%s1 + $0x10] sm:$0xff]
  %v69 = vld [vmem:[%s1 + $0x18] sm:$0xff]
  %v70 = vld [vmem:[%s1 + $0x20] sm:$0xff]
  %v71 = vld [vmem:[%s1 + $0x28] sm:$0xff]
  %v72 = vld [vmem:[%s1 + $0x30] sm:$0xff]
  %v73 = vld [vmem:[%s1 + $0x38] sm:$0xff]
  %v74 = vld [vmem:[%s1 + $0x40] sm:$0xff]
  %v75 = vld [vmem:[%s1 + $0x48] sm:$0xff]
  %v76 = vld [vmem:[%s1 + $0x50] sm:$0xff]
  %v77 = vld [vmem:[%s1 + $0x58] sm:$0xff]
  %v78 = vld [vmem:[%s1 + $0x60] sm:$0xff]
  %v79 = vld [vmem:[%s1 + $0x68] sm:$0xff]
  %v80 = vld [vmem:[%s1 + $0x70] sm:$0xff]
  %v81 = vld [vmem:[%s1 + $0x78] sm:$0xff]
  %82 = vmatprep.subr.mxu0 0.0
  %83 = vmatpush1.msra.mxu0 %v66
  %84 = vmatprep.subr.mxu0 0.0
  %85 = vmatpush1.msra.mxu0 %v67
  %86 = vmatprep.subr.mxu0 0.0
  %87 = vmatpush1.msra.mxu0 %v68
  %88 = vmatprep.subr.mxu0 0.0
  %89 = vmatpush1.msra.mxu0 %v69
  %90 = vmatprep.subr.mxu0 0.0
  %91 = vmatpush1.msra.mxu0 %v70
  %92 = vmatprep.subr.mxu0 0.0
  %93 = vmatpush1.msra.mxu0 %v71
  %94 = vmatprep.subr.mxu0 0.0
  %95 = vmatpush1.msra.mxu0 %v72
  %96 = vmatprep.subr.mxu0 0.0
  %97 = vmatpush1.msra.mxu0 %v73
  %98 = vmatprep.subr.mxu0 0.0
  %99 = vmatpush1.msra.mxu0 %v74
  %100 = vmatprep.subr.mxu0 0.0
  %101 = vmatpush1.msra.mxu0 %v75
  %102 = vmatprep.subr.mxu0 0.0
  %103 = vmatpush1.msra.mxu0 %v76
  %104 = vmatprep.subr.mxu0 0.0
  %105 = vmatpush1.msra.mxu0 %v77
  %106 = vmatprep.subr.mxu0 0.0
  %107 = vmatpush1.msra.mxu0 %v78
  %108 = vmatprep.subr.mxu0 0.0
  %109 = vmatpush1.msra.mxu0 %v79
  %110 = vmatprep.subr.mxu0 0.0
  %111 = vmatpush1.msra.mxu0 %v80
  %112 = vmatprep.subr.mxu0 0.0
  %113 = vmatpush1.msra.mxu0 %v81
  %114 = vmatprep.subr.mxu0 0.0
  %115 = vmatpush1.msra.mxu0 0.0
  %116 = vmatprep.subr.mxu0 0.0
  %117 = vmatpush1.msra.mxu0 0.0
  %118 = vmatprep.subr.mxu0 0.0
  %119 = vmatpush1.msra.mxu0 0.0
  %120 = vmatprep.subr.mxu0 0.0
  %121 = vmatpush1.msra.mxu0 0.0
  %122 = vmatprep.subr.mxu0 0.0
  %123 = vmatpush1.msra.mxu0 0.0
  %124 = vmatprep.subr.mxu0 0.0
  %125 = vmatpush1.msra.mxu0 0.0
  %126 = vmatprep.subr.mxu0 0.0
  %127 = vmatpush1.msra.mxu0 0.0
  %128 = vmatprep.subr.mxu0 0.0
  %129 = vmatpush1.msra.mxu0 0.0
  %130 = vmatprep.subr.mxu0 0.0
  %131 = vmatpush1.msra.mxu0 0.0
  %132 = vmatprep.subr.mxu0 0.0
  %133 = vmatpush1.msra.mxu0 0.0
  %134 = vmatprep.subr.mxu0 0.0
  %135 = vmatpush1.msra.mxu0 0.0
  %136 = vmatprep.subr.mxu0 0.0
  %137 = vmatpush1.msra.mxu0 0.0
  %138 = vmatprep.subr.mxu0 0.0
  %139 = vmatpush1.msra.mxu0 0.0
  %140 = vmatprep.subr.mxu0 0.0
  %141 = vmatpush1.msra.mxu0 0.0
  %142 = vmatprep.subr.mxu0 0.0
  %143 = vmatpush1.msra.mxu0 0.0
  %144 = vmatprep.subr.mxu0 0.0
  %145 = vmatpush1.msra.mxu0 0.0
  %146 = vmatprep.mubr.f32.mxu0 0.0
  %147 = vmatmul.mubr.f32.gmra.mrb[0].mxu0 %v50
  %v148 = vpop.f32.mrb[0].mxu0
  %v149 = vadd.f32 0.0, %v148
  %v150 = vpop.f32.mrb[0].mxu0
  %151 = vmatprep.mubr.f32.mxu0 0.0
  %152 = vmatmul.mubr.f32.gmra.mrb[0].mxu0 %v51
  %v153 = vpop.f32.mrb[0].mxu0
  %v154 = vadd.f32 0.0, %v153
  %v155 = vpop.f32.mrb[0].mxu0
  %156 = vmatprep.mubr.f32.mxu0 0.0
  %157 = vmatmul.mubr.f32.gmra.mrb[0].mxu0 %v52
  %v158 = vpop.f32.mrb[0].mxu0
  %v159 = vadd.f32 0.0, %v158
  %v160 = vpop.f32.mrb[0].mxu0
  %161 = vmatprep.mubr.f32.mxu0 0.0
  %162 = vmatmul.mubr.f32.gmra.mrb[0].mxu0 %v53
  %v163 = vpop.f32.mrb[0].mxu0
  %v164 = vadd.f32 0.0, %v163
  %v165 = vpop.f32.mrb[0].mxu0
  %166 = vmatprep.mubr.f32.mxu0 0.0
  %167 = vmatmul.mubr.f32.gmra.mrb[0].mxu0 %v54
  %v168 = vpop.f32.mrb[0].mxu0
  %v169 = vadd.f32 0.0, %v168
  %v170 = vpop.f32.mrb[0].mxu0
  %171 = vmatprep.mubr.f32.mxu0 0.0
  %172 = vmatmul.mubr.f32.gmra.mrb[0].mxu0 %v55
  %v173 = vpop.f32.mrb[0].mxu0
  %v174 = vadd.f32 0.0, %v173
  %v175 = vpop.f32.mrb[0].mxu0
  %176 = vmatprep.mubr.f32.mxu0 0.0
  %177 = vmatmul.mubr.f32.gmra.mrb[0].mxu0 %v56
  %v178 = vpop.f32.mrb[0].mxu0
  %v179 = vadd.f32 0.0, %v178
  %v180 = vpop.f32.mrb[0].mxu0
  %181 = vmatprep.mubr.f32.mxu0 0.0
  %182 = vmatmul.mubr.f32.gmra.mrb[0].mxu0 %v57
  %v183 = vpop.f32.mrb[0].mxu0
  %v184 = vadd.f32 0.0, %v183
  %v185 = vpop.f32.mrb[0].mxu0
  %186 = vmatprep.mubr.f32.mxu0 0.0
  %187 = vmatmul.mubr.f32.gmra.mrb[0].mxu0 %v58
  %v188 = vpop.f32.mrb[0].mxu0
  %v189 = vadd.f32 0.0, %v188
  %v190 = vpop.f32.mrb[0].mxu0
  %191 = vmatprep.mubr.f32.mxu0 0.0
  %192 = vmatmul.mubr.f32.gmra.mrb[0].mxu0 %v59
  %v193 = vpop.f32.mrb[0].mxu0
  %v194 = vadd.f32 0.0, %v193
  %v195 = vpop.f32.mrb[0].mxu0
  %196 = vmatprep.mubr.f32.mxu0 0.0
  %197 = vmatmul.mubr.f32.gmra.mrb[0].mxu0 %v60
  %v198 = vpop.f32.mrb[0].mxu0
  %v199 = vadd.f32 0.0, %v198
  %v200 = vpop.f32.mrb[0].mxu0
  %201 = vmatprep.mubr.f32.mxu0 0.0
  %202 = vmatmul.mubr.f32.gmra.mrb[0].mxu0 %v61
  %v203 = vpop.f32.mrb[0].mxu0
  %v204 = vadd.f32 0.0, %v203
  %v205 = vpop.f32.mrb[0].mxu0
  %206 = vmatprep.mubr.f32.mxu0 0.0
  %207 = vmatmul.mubr.f32.gmra.mrb[0].mxu0 %v62
  %v208 = vpop.f32.mrb[0].mxu0
  %v209 = vadd.f32 0.0, %v208
  %v210 = vpop.f32.mrb[0].mxu0
  %211 = vmatprep.mubr.f32.mxu0 0.0
  %212 = vmatmul.mubr.f32.gmra.mrb[0].mxu0 %v63
  %v213 = vpop.f32.mrb[0].mxu0
  %v214 = vadd.f32 0.0, %v213
  %v215 = vpop.f32.mrb[0].mxu0
  %216 = vmatprep.mubr.f32.mxu0 0.0
  %217 = vmatmul.mubr.f32.gmra.mrb[0].mxu0 %v64
  %v218 = vpop.f32.mrb[0].mxu0
  %v219 = vadd.f32 0.0, %v218
  %v220 = vpop.f32.mrb[0].mxu0
  %221 = vmatprep.mubr.f32.mxu0 0.0
  %222 = vmatmul.mubr.f32.gmra.mrb[0].mxu0 %v65
  %v223 = vpop.f32.mrb[0].mxu0
  %v224 = vadd.f32 0.0, %v223
  %v225 = vpop.f32.mrb[0].mxu0
  %226 = vdwg.mxu0
  %v227 = vadd.f32 %v34, %v149
  %v228 = vadd.f32 %v35, %v154
  %v229 = vadd.f32 %v36, %v159
  %v230 = vadd.f32 %v37, %v164
  %v231 = vadd.f32 %v38, %v169
  %v232 = vadd.f32 %v39, %v174
  %v233 = vadd.f32 %v40, %v179
  %v234 = vadd.f32 %v41, %v184
  %v235 = vadd.f32 %v42, %v189
  %v236 = vadd.f32 %v43, %v194
  %v237 = vadd.f32 %v44, %v199
  %v238 = vadd.f32 %v45, %v204
  %v239 = vadd.f32 %v46, %v209
  %v240 = vadd.f32 %v47, %v214
  %v241 = vadd.f32 %v48, %v219
  %v242 = vadd.f32 %v49, %v224
  %243 = vst [vmem:[#allocation2] sm:$0xff] %v227
  %244 = vst [vmem:[#allocation2 + $0x8] sm:$0xff] %v228
  %245 = vst [vmem:[#allocation2 + $0x10] sm:$0xff] %v229
  %246 = vst [vmem:[#allocation2 + $0x18] sm:$0xff] %v230
  %247 = vst [vmem:[#allocation2 + $0x20] sm:$0xff] %v231
  %248 = vst [vmem:[#allocation2 + $0x28] sm:$0xff] %v232
  %249 = vst [vmem:[#allocation2 + $0x30] sm:$0xff] %v233
  %250 = vst [vmem:[#allocation2 + $0x38] sm:$0xff] %v234
  %251 = vst [vmem:[#allocation2 + $0x40] sm:$0xff] %v235
  %252 = vst [vmem:[#allocation2 + $0x48] sm:$0xff] %v236
  %253 = vst [vmem:[#allocation2 + $0x50] sm:$0xff] %v237
  %254 = vst [vmem:[#allocation2 + $0x58] sm:$0xff] %v238
  %255 = vst [vmem:[#allocation2 + $0x60] sm:$0xff] %v239
  %256 = vst [vmem:[#allocation2 + $0x68] sm:$0xff] %v240
  %257 = vst [vmem:[#allocation2 + $0x70] sm:$0xff] %v241
  %258 = vst [vmem:[#allocation2 + $0x78] sm:$0xff] %v242
  // Predicated region
  $region18: #{sgconv_forward.6} parent=0 // pred_check
    %p259 = pneg %p14
  $region19: #{sgconv_forward.6} parent=0 // pred_check_branch
    %261 = sbr.rel (%p259) target = $region21
  $region20: #{sgconv_forward.6} parent=0 // pred_region
    %v262 = vld [vmem:[%s2] sm:$0xff]
    %v263 = vld [vmem:[%s2 + $0x8] sm:$0xff]
    %v264 = vld [vmem:[%s2 + $0x10] sm:$0xff]
    %v265 = vld [vmem:[%s2 + $0x18] sm:$0xff]
    %v266 = vld [vmem:[%s2 + $0x20] sm:$0xff]
    %v267 = vld [vmem:[%s2 + $0x28] sm:$0xff]
    %v268 = vld [vmem:[%s2 + $0x30] sm:$0xff]
    %v269 = vld [vmem:[%s2 + $0x38] sm:$0xff]
    %v270 = vld [vmem:[%s2 + $0x40] sm:$0xff]
    %v271 = vld [vmem:[%s2 + $0x48] sm:$0xff]
    %v272 = vld [vmem:[%s2 + $0x50] sm:$0xff]
    %v273 = vld [vmem:[%s2 + $0x58] sm:$0xff]
    %v274 = vld [vmem:[%s2 + $0x60] sm:$0xff]
    %v275 = vld [vmem:[%s2 + $0x68] sm:$0xff]
    %v276 = vld [vmem:[%s2 + $0x70] sm:$0xff]
    %v277 = vld [vmem:[%s2 + $0x78] sm:$0xff]
    %v278 = vld [vmem:[#allocation2] sm:$0xff]
    %v279 = vld [vmem:[#allocation2 + $0x8] sm:$0xff]
    %v280 = vld [vmem:[#allocation2 + $0x10] sm:$0xff]
    %v281 = vld [vmem:[#allocation2 + $0x18] sm:$0xff]
    %v282 = vld [vmem:[#allocation2 + $0x20] sm:$0xff]
    %v283 = vld [vmem:[#allocation2 + $0x28] sm:$0xff]
    %v284 = vld [vmem:[#allocation2 + $0x30] sm:$0xff]
    %v285 = vld [vmem:[#allocation2 + $0x38] sm:$0xff]
    %v286 = vld [vmem:[#allocation2 + $0x40] sm:$0xff]
    %v287 = vld [vmem:[#allocation2 + $0x48] sm:$0xff]
    %v288 = vld [vmem:[#allocation2 + $0x50] sm:$0xff]
    %v289 = vld [vmem:[#allocation2 + $0x58] sm:$0xff]
    %v290 = vld [vmem:[#allocation2 + $0x60] sm:$0xff]
    %v291 = vld [vmem:[#allocation2 + $0x68] sm:$0xff]
    %v292 = vld [vmem:[#allocation2 + $0x70] sm:$0xff]
    %v293 = vld [vmem:[#allocation2 + $0x78] sm:$0xff]
    %295 = vset.pattern.permute.xlu0 0
    %296 = vperm.xlu0 %295, %v262
    %v297 = vpop.permute.xlu0 %296
    %300 = vset.pattern.permute.xlu0 0
    %301 = vperm.xlu0 %300, %v263
    %v302 = vpop.permute.xlu0 %301
    %305 = vset.pattern.permute.xlu0 0
    %306 = vperm.xlu0 %305, %v264
    %v307 = vpop.permute.xlu0 %306
    %310 = vset.pattern.permute.xlu0 0
    %311 = vperm.xlu0 %310, %v265
    %v312 = vpop.permute.xlu0 %311
    %315 = vset.pattern.permute.xlu0 0
    %316 = vperm.xlu0 %315, %v266
    %v317 = vpop.permute.xlu0 %316
    %320 = vset.pattern.permute.xlu0 0
    %321 = vperm.xlu0 %320, %v267
    %v322 = vpop.permute.xlu0 %321
    %325 = vset.pattern.permute.xlu0 0
    %326 = vperm.xlu0 %325, %v268
    %v327 = vpop.permute.xlu0 %326
    %330 = vset.pattern.permute.xlu0 0
    %331 = vperm.xlu0 %330, %v269
    %v332 = vpop.permute.xlu0 %331
    %335 = vset.pattern.permute.xlu0 0
    %336 = vperm.xlu0 %335, %v270
    %v337 = vpop.permute.xlu0 %336
    %340 = vset.pattern.permute.xlu0 0
    %341 = vperm.xlu0 %340, %v271
    %v342 = vpop.permute.xlu0 %341
    %345 = vset.pattern.permute.xlu0 0
    %346 = vperm.xlu0 %345, %v272
    %v347 = vpop.permute.xlu0 %346
    %350 = vset.pattern.permute.xlu0 0
    %351 = vperm.xlu0 %350, %v273
    %v352 = vpop.permute.xlu0 %351
    %355 = vset.pattern.permute.xlu0 0
    %356 = vperm.xlu0 %355, %v274
    %v357 = vpop.permute.xlu0 %356
    %360 = vset.pattern.permute.xlu0 0
    %361 = vperm.xlu0 %360, %v275
    %v362 = vpop.permute.xlu0 %361
    %365 = vset.pattern.permute.xlu0 0
    %366 = vperm.xlu0 %365, %v276
    %v367 = vpop.permute.xlu0 %366
    %370 = vset.pattern.permute.xlu0 0
    %371 = vperm.xlu0 %370, %v277
    %v372 = vpop.permute.xlu0 %371
    %v374 = vmul.f32 %v297, %v278
    %v375 = vmul.f32 %v302, %v279
    %v376 = vmul.f32 %v307, %v280
    %v377 = vmul.f32 %v312, %v281
    %v378 = vmul.f32 %v317, %v282
    %v379 = vmul.f32 %v322, %v283
    %v380 = vmul.f32 %v327, %v284
    %v381 = vmul.f32 %v332, %v285
    %v382 = vmul.f32 %v337, %v286
    %v383 = vmul.f32 %v342, %v287
    %v384 = vmul.f32 %v347, %v288
    %v385 = vmul.f32 %v352, %v289
    %v386 = vmul.f32 %v357, %v290
    %v387 = vmul.f32 %v362, %v291
    %v388 = vmul.f32 %v367, %v292
    %v389 = vmul.f32 %v372, %v293
    %390 = vst [vmem:[%s3] sm:$0xff] %v374
    %391 = vst [vmem:[%s3 + $0x8] sm:$0xff] %v375
    %392 = vst [vmem:[%s3 + $0x10] sm:$0xff] %v376
    %393 = vst [vmem:[%s3 + $0x18] sm:$0xff] %v377
    %394 = vst [vmem:[%s3 + $0x20] sm:$0xff] %v378
    %395 = vst [vmem:[%s3 + $0x28] sm:$0xff] %v379
    %396 = vst [vmem:[%s3 + $0x30] sm:$0xff] %v380
    %397 = vst [vmem:[%s3 + $0x38] sm:$0xff] %v381
    %398 = vst [vmem:[%s3 + $0x40] sm:$0xff] %v382
    %399 = vst [vmem:[%s3 + $0x48] sm:$0xff] %v383
    %400 = vst [vmem:[%s3 + $0x50] sm:$0xff] %v384
    %401 = vst [vmem:[%s3 + $0x58] sm:$0xff] %v385
    %402 = vst [vmem:[%s3 + $0x60] sm:$0xff] %v386
    %403 = vst [vmem:[%s3 + $0x68] sm:$0xff] %v387
    %404 = vst [vmem:[%s3 + $0x70] sm:$0xff] %v388
    %405 = vst [vmem:[%s3 + $0x78] sm:$0xff] %v389
  $region21: #{sgconv_forward.6} parent=0 // pred_fallthru
    _
  // Predicated region
  $region22: #{sgconv_forward.6} parent=0 // pred_check
    _
  $region23: #{sgconv_forward.6} parent=0 // pred_check_branch
    %407 = sbr.rel (0) target = $region25
  $region24: #{sgconv_forward.6} parent=0 // pred_region
    _
  $region25: #{sgconv_forward.6} parent=0 // pred_fallthru
    _
  // Predicated region
  $region26: #{sgconv_forward.6} parent=0 // pred_check
    _
  $region27: #{sgconv_forward.6} parent=0 // pred_check_branch
    %409 = sbr.rel (0) target = $region29
  $region28: #{sgconv_forward.6} parent=0 // pred_region
    _
  $region29: #{sgconv_forward.6} parent=0 // pred_fallthru
    _

// kernel: sgconv_forward.7
$region0: #{sgconv_forward.7}
  #allocation0 [shape = 'u32[]', space=smem, size = 0x4, offset = 0x4, fixed_abs, tag = 'smem constant byte address 0x4 - core index']
  #allocation1 [shape = 'u32[144,128]{1,0:T(1,128)}', space=vmem, size = 0x12000, scoped, tag = 'internal scratch']
  #allocation2 [shape = 'f32[128,128]{1,0:T(8,128)}', space=vmem, size = 0x10000, scoped, tag = 'scratch operand']
  %s0 = inlined_call_operand.vmem [shape: f32[128,128], index: 0, kind: input, shape index: {}]
  %s1 = inlined_call_operand.vmem [shape: f32[128,128], index: 1, kind: input, shape index: {}]
  %s2 = inlined_call_operand.vmem [shape: f32[128,1], index: 2, kind: input, shape index: {}]
  %s3 = inlined_call_operand.vmem [shape: f32[1,128], index: 3, kind: input, shape index: {}]
  %s4 = inlined_call_operand.vmem [shape: f32[128,128], index: 4, kind: output, shape index: {}]
  %s5 = sld [smem:[#allocation0]]
  $region34: #{sgconv_forward.7} parent=0
    _
  %s7 = ssub.s32 1, %s5
  %s8 = scalar_select 0, %s7, %s5
  // Predicated region
  $region2: #{sgconv_forward.7} parent=0 // pred_check
    _
  $region3: #{sgconv_forward.7} parent=0 // pred_check_branch
    %10 = sbr.rel (0) target = $region5
  $region4: #{sgconv_forward.7} parent=0 // pred_region
    _
  $region5: #{sgconv_forward.7} parent=0 // pred_fallthru
    _
  // Predicated region
  $region6: #{sgconv_forward.7} parent=0 // pred_check
    _
  $region7: #{sgconv_forward.7} parent=0 // pred_check_branch
    %12 = sbr.rel (0) target = $region9
  $region8: #{sgconv_forward.7} parent=0 // pred_region
    _
  $region9: #{sgconv_forward.7} parent=0 // pred_fallthru
    _
  // Predicated region
  $region10: #{sgconv_forward.7} parent=0 // pred_check
    _
  $region11: #{sgconv_forward.7} parent=0 // pred_check_branch
    %14 = sbr.rel (0) target = $region13
  $region12: #{sgconv_forward.7} parent=0 // pred_region
    _
  $region13: #{sgconv_forward.7} parent=0 // pred_fallthru
    _
  // Predicated region
  $region14: #{sgconv_forward.7} parent=0 // pred_check
    _
  $region15: #{sgconv_forward.7} parent=0 // pred_check_branch
    %16 = sbr.rel (0) target = $region17
  $region16: #{sgconv_forward.7} parent=0 // pred_region
    _
  $region17: #{sgconv_forward.7} parent=0 // pred_fallthru
    _
  %p17 = scmp.eq.s32.totalorder 0, 0
  // Predicated region
  $region18: #{sgconv_forward.7} parent=0 // pred_check
    %p18 = pneg %p17
  $region19: #{sgconv_forward.7} parent=0 // pred_check_branch
    %20 = sbr.rel (%p18) target = $region21
  $region20: #{sgconv_forward.7} parent=0 // pred_region
    %21 = vst [vmem:[#allocation2] sm:$0xff] 0.0
    %22 = vst [vmem:[#allocation2 + $0x8] sm:$0xff] 0.0
    %23 = vst [vmem:[#allocation2 + $0x10] sm:$0xff] 0.0
    %24 = vst [vmem:[#allocation2 + $0x18] sm:$0xff] 0.0
    %25 = vst [vmem:[#allocation2 + $0x20] sm:$0xff] 0.0
    %26 = vst [vmem:[#allocation2 + $0x28] sm:$0xff] 0.0
    %27 = vst [vmem:[#allocation2 + $0x30] sm:$0xff] 0.0
    %28 = vst [vmem:[#allocation2 + $0x38] sm:$0xff] 0.0
    %29 = vst [vmem:[#allocation2 + $0x40] sm:$0xff] 0.0
    %30 = vst [vmem:[#allocation2 + $0x48] sm:$0xff] 0.0
    %31 = vst [vmem:[#allocation2 + $0x50] sm:$0xff] 0.0
    %32 = vst [vmem:[#allocation2 + $0x58] sm:$0xff] 0.0
    %33 = vst [vmem:[#allocation2 + $0x60] sm:$0xff] 0.0
    %34 = vst [vmem:[#allocation2 + $0x68] sm:$0xff] 0.0
    %35 = vst [vmem:[#allocation2 + $0x70] sm:$0xff] 0.0
    %36 = vst [vmem:[#allocation2 + $0x78] sm:$0xff] 0.0
  $region21: #{sgconv_forward.7} parent=0 // pred_fallthru
    _
  %v37 = vld [vmem:[#allocation2] sm:$0xff]
  %v38 = vld [vmem:[#allocation2 + $0x8] sm:$0xff]
  %v39 = vld [vmem:[#allocation2 + $0x10] sm:$0xff]
  %v40 = vld [vmem:[#allocation2 + $0x18] sm:$0xff]
  %v41 = vld [vmem:[#allocation2 + $0x20] sm:$0xff]
  %v42 = vld [vmem:[#allocation2 + $0x28] sm:$0xff]
  %v43 = vld [vmem:[#allocation2 + $0x30] sm:$0xff]
  %v44 = vld [vmem:[#allocation2 + $0x38] sm:$0xff]
  %v45 = vld [vmem:[#allocation2 + $0x40] sm:$0xff]
  %v46 = vld [vmem:[#allocation2 + $0x48] sm:$0xff]
  %v47 = vld [vmem:[#allocation2 + $0x50] sm:$0xff]
  %v48 = vld [vmem:[#allocation2 + $0x58] sm:$0xff]
  %v49 = vld [vmem:[#allocation2 + $0x60] sm:$0xff]
  %v50 = vld [vmem:[#allocation2 + $0x68] sm:$0xff]
  %v51 = vld [vmem:[#allocation2 + $0x70] sm:$0xff]
  %v52 = vld [vmem:[#allocation2 + $0x78] sm:$0xff]
  %v53 = vld [vmem:[%s0] sm:$0xff]
  %v54 = vld [vmem:[%s0 + $0x8] sm:$0xff]
  %v55 = vld [vmem:[%s0 + $0x10] sm:$0xff]
  %v56 = vld [vmem:[%s0 + $0x18] sm:$0xff]
  %v57 = vld [vmem:[%s0 + $0x20] sm:$0xff]
  %v58 = vld [vmem:[%s0 + $0x28] sm:$0xff]
  %v59 = vld [vmem:[%s0 + $0x30] sm:$0xff]
  %v60 = vld [vmem:[%s0 + $0x38] sm:$0xff]
  %v61 = vld [vmem:[%s0 + $0x40] sm:$0xff]
  %v62 = vld [vmem:[%s0 + $0x48] sm:$0xff]
  %v63 = vld [vmem:[%s0 + $0x50] sm:$0xff]
  %v64 = vld [vmem:[%s0 + $0x58] sm:$0xff]
  %v65 = vld [vmem:[%s0 + $0x60] sm:$0xff]
  %v66 = vld [vmem:[%s0 + $0x68] sm:$0xff]
  %v67 = vld [vmem:[%s0 + $0x70] sm:$0xff]
  %v68 = vld [vmem:[%s0 + $0x78] sm:$0xff]
  %v69 = vld [vmem:[%s1] sm:$0xff]
  %v70 = vld [vmem:[%s1 + $0x8] sm:$0xff]
  %v71 = vld [vmem:[%s1 + $0x10] sm:$0xff]
  %v72 = vld [vmem:[%s1 + $0x18] sm:$0xff]
  %v73 = vld [vmem:[%s1 + $0x20] sm:$0xff]
  %v74 = vld [vmem:[%s1 + $0x28] sm:$0xff]
  %v75 = vld [vmem:[%s1 + $0x30] sm:$0xff]
  %v76 = vld [vmem:[%s1 + $0x38] sm:$0xff]
  %v77 = vld [vmem:[%s1 + $0x40] sm:$0xff]
  %v78 = vld [vmem:[%s1 + $0x48] sm:$0xff]
  %v79 = vld [vmem:[%s1 + $0x50] sm:$0xff]
  %v80 = vld [vmem:[%s1 + $0x58] sm:$0xff]
  %v81 = vld [vmem:[%s1 + $0x60] sm:$0xff]
  %v82 = vld [vmem:[%s1 + $0x68] sm:$0xff]
  %v83 = vld [vmem:[%s1 + $0x70] sm:$0xff]
  %v84 = vld [vmem:[%s1 + $0x78] sm:$0xff]
  %85 = vmatprep.subr.mxu0 0.0
  %86 = vmatpush1.msra.mxu0 %v69
  %87 = vmatprep.subr.mxu0 0.0
  %88 = vmatpush1.msra.mxu0 %v70
  %89 = vmatprep.subr.mxu0 0.0
  %90 = vmatpush1.msra.mxu0 %v71
  %91 = vmatprep.subr.mxu0 0.0
  %92 = vmatpush1.msra.mxu0 %v72
  %93 = vmatprep.subr.mxu0 0.0
  %94 = vmatpush1.msra.mxu0 %v73
  %95 = vmatprep.subr.mxu0 0.0
  %96 = vmatpush1.msra.mxu0 %v74
  %97 = vmatprep.subr.mxu0 0.0
  %98 = vmatpush1.msra.mxu0 %v75
  %99 = vmatprep.subr.mxu0 0.0
  %100 = vmatpush1.msra.mxu0 %v76
  %101 = vmatprep.subr.mxu0 0.0
  %102 = vmatpush1.msra.mxu0 %v77
  %103 = vmatprep.subr.mxu0 0.0
  %104 = vmatpush1.msra.mxu0 %v78
  %105 = vmatprep.subr.mxu0 0.0
  %106 = vmatpush1.msra.mxu0 %v79
  %107 = vmatprep.subr.mxu0 0.0
  %108 = vmatpush1.msra.mxu0 %v80
  %109 = vmatprep.subr.mxu0 0.0
  %110 = vmatpush1.msra.mxu0 %v81
  %111 = vmatprep.subr.mxu0 0.0
  %112 = vmatpush1.msra.mxu0 %v82
  %113 = vmatprep.subr.mxu0 0.0
  %114 = vmatpush1.msra.mxu0 %v83
  %115 = vmatprep.subr.mxu0 0.0
  %116 = vmatpush1.msra.mxu0 %v84
  %117 = vmatprep.subr.mxu0 0.0
  %118 = vmatpush1.msra.mxu0 0.0
  %119 = vmatprep.subr.mxu0 0.0
  %120 = vmatpush1.msra.mxu0 0.0
  %121 = vmatprep.subr.mxu0 0.0
  %122 = vmatpush1.msra.mxu0 0.0
  %123 = vmatprep.subr.mxu0 0.0
  %124 = vmatpush1.msra.mxu0 0.0
  %125 = vmatprep.subr.mxu0 0.0
  %126 = vmatpush1.msra.mxu0 0.0
  %127 = vmatprep.subr.mxu0 0.0
  %128 = vmatpush1.msra.mxu0 0.0
  %129 = vmatprep.subr.mxu0 0.0
  %130 = vmatpush1.msra.mxu0 0.0
  %131 = vmatprep.subr.mxu0 0.0
  %132 = vmatpush1.msra.mxu0 0.0
  %133 = vmatprep.subr.mxu0 0.0
  %134 = vmatpush1.msra.mxu0 0.0
  %135 = vmatprep.subr.mxu0 0.0
  %136 = vmatpush1.msra.mxu0 0.0
  %137 = vmatprep.subr.mxu0 0.0
  %138 = vmatpush1.msra.mxu0 0.0
  %139 = vmatprep.subr.mxu0 0.0
  %140 = vmatpush1.msra.mxu0 0.0
  %141 = vmatprep.subr.mxu0 0.0
  %142 = vmatpush1.msra.mxu0 0.0
  %143 = vmatprep.subr.mxu0 0.0
  %144 = vmatpush1.msra.mxu0 0.0
  %145 = vmatprep.subr.mxu0 0.0
  %146 = vmatpush1.msra.mxu0 0.0
  %147 = vmatprep.subr.mxu0 0.0
  %148 = vmatpush1.msra.mxu0 0.0
  %149 = vmatprep.mubr.f32.mxu0 0.0
  %150 = vmatmul.mubr.f32.gmra.mrb[0].mxu0 %v53
  %v151 = vpop.f32.mrb[0].mxu0
  %v152 = vadd.f32 0.0, %v151
  %v153 = vpop.f32.mrb[0].mxu0
  %154 = vmatprep.mubr.f32.mxu0 0.0
  %155 = vmatmul.mubr.f32.gmra.mrb[0].mxu0 %v54
  %v156 = vpop.f32.mrb[0].mxu0
  %v157 = vadd.f32 0.0, %v156
  %v158 = vpop.f32.mrb[0].mxu0
  %159 = vmatprep.mubr.f32.mxu0 0.0
  %160 = vmatmul.mubr.f32.gmra.mrb[0].mxu0 %v55
  %v161 = vpop.f32.mrb[0].mxu0
  %v162 = vadd.f32 0.0, %v161
  %v163 = vpop.f32.mrb[0].mxu0
  %164 = vmatprep.mubr.f32.mxu0 0.0
  %165 = vmatmul.mubr.f32.gmra.mrb[0].mxu0 %v56
  %v166 = vpop.f32.mrb[0].mxu0
  %v167 = vadd.f32 0.0, %v166
  %v168 = vpop.f32.mrb[0].mxu0
  %169 = vmatprep.mubr.f32.mxu0 0.0
  %170 = vmatmul.mubr.f32.gmra.mrb[0].mxu0 %v57
  %v171 = vpop.f32.mrb[0].mxu0
  %v172 = vadd.f32 0.0, %v171
  %v173 = vpop.f32.mrb[0].mxu0
  %174 = vmatprep.mubr.f32.mxu0 0.0
  %175 = vmatmul.mubr.f32.gmra.mrb[0].mxu0 %v58
  %v176 = vpop.f32.mrb[0].mxu0
  %v177 = vadd.f32 0.0, %v176
  %v178 = vpop.f32.mrb[0].mxu0
  %179 = vmatprep.mubr.f32.mxu0 0.0
  %180 = vmatmul.mubr.f32.gmra.mrb[0].mxu0 %v59
  %v181 = vpop.f32.mrb[0].mxu0
  %v182 = vadd.f32 0.0, %v181
  %v183 = vpop.f32.mrb[0].mxu0
  %184 = vmatprep.mubr.f32.mxu0 0.0
  %185 = vmatmul.mubr.f32.gmra.mrb[0].mxu0 %v60
  %v186 = vpop.f32.mrb[0].mxu0
  %v187 = vadd.f32 0.0, %v186
  %v188 = vpop.f32.mrb[0].mxu0
  %189 = vmatprep.mubr.f32.mxu0 0.0
  %190 = vmatmul.mubr.f32.gmra.mrb[0].mxu0 %v61
  %v191 = vpop.f32.mrb[0].mxu0
  %v192 = vadd.f32 0.0, %v191
  %v193 = vpop.f32.mrb[0].mxu0
  %194 = vmatprep.mubr.f32.mxu0 0.0
  %195 = vmatmul.mubr.f32.gmra.mrb[0].mxu0 %v62
  %v196 = vpop.f32.mrb[0].mxu0
  %v197 = vadd.f32 0.0, %v196
  %v198 = vpop.f32.mrb[0].mxu0
  %199 = vmatprep.mubr.f32.mxu0 0.0
  %200 = vmatmul.mubr.f32.gmra.mrb[0].mxu0 %v63
  %v201 = vpop.f32.mrb[0].mxu0
  %v202 = vadd.f32 0.0, %v201
  %v203 = vpop.f32.mrb[0].mxu0
  %204 = vmatprep.mubr.f32.mxu0 0.0
  %205 = vmatmul.mubr.f32.gmra.mrb[0].mxu0 %v64
  %v206 = vpop.f32.mrb[0].mxu0
  %v207 = vadd.f32 0.0, %v206
  %v208 = vpop.f32.mrb[0].mxu0
  %209 = vmatprep.mubr.f32.mxu0 0.0
  %210 = vmatmul.mubr.f32.gmra.mrb[0].mxu0 %v65
  %v211 = vpop.f32.mrb[0].mxu0
  %v212 = vadd.f32 0.0, %v211
  %v213 = vpop.f32.mrb[0].mxu0
  %214 = vmatprep.mubr.f32.mxu0 0.0
  %215 = vmatmul.mubr.f32.gmra.mrb[0].mxu0 %v66
  %v216 = vpop.f32.mrb[0].mxu0
  %v217 = vadd.f32 0.0, %v216
  %v218 = vpop.f32.mrb[0].mxu0
  %219 = vmatprep.mubr.f32.mxu0 0.0
  %220 = vmatmul.mubr.f32.gmra.mrb[0].mxu0 %v67
  %v221 = vpop.f32.mrb[0].mxu0
  %v222 = vadd.f32 0.0, %v221
  %v223 = vpop.f32.mrb[0].mxu0
  %224 = vmatprep.mubr.f32.mxu0 0.0
  %225 = vmatmul.mubr.f32.gmra.mrb[0].mxu0 %v68
  %v226 = vpop.f32.mrb[0].mxu0
  %v227 = vadd.f32 0.0, %v226
  %v228 = vpop.f32.mrb[0].mxu0
  %229 = vdwg.mxu0
  %v230 = vadd.f32 %v37, %v152
  %v231 = vadd.f32 %v38, %v157
  %v232 = vadd.f32 %v39, %v162
  %v233 = vadd.f32 %v40, %v167
  %v234 = vadd.f32 %v41, %v172
  %v235 = vadd.f32 %v42, %v177
  %v236 = vadd.f32 %v43, %v182
  %v237 = vadd.f32 %v44, %v187
  %v238 = vadd.f32 %v45, %v192
  %v239 = vadd.f32 %v46, %v197
  %v240 = vadd.f32 %v47, %v202
  %v241 = vadd.f32 %v48, %v207
  %v242 = vadd.f32 %v49, %v212
  %v243 = vadd.f32 %v50, %v217
  %v244 = vadd.f32 %v51, %v222
  %v245 = vadd.f32 %v52, %v227
  %246 = vst [vmem:[#allocation2] sm:$0xff] %v230
  %247 = vst [vmem:[#allocation2 + $0x8] sm:$0xff] %v231
  %248 = vst [vmem:[#allocation2 + $0x10] sm:$0xff] %v232
  %249 = vst [vmem:[#allocation2 + $0x18] sm:$0xff] %v233
  %250 = vst [vmem:[#allocation2 + $0x20] sm:$0xff] %v234
  %251 = vst [vmem:[#allocation2 + $0x28] sm:$0xff] %v235
  %252 = vst [vmem:[#allocation2 + $0x30] sm:$0xff] %v236
  %253 = vst [vmem:[#allocation2 + $0x38] sm:$0xff] %v237
  %254 = vst [vmem:[#allocation2 + $0x40] sm:$0xff] %v238
  %255 = vst [vmem:[#allocation2 + $0x48] sm:$0xff] %v239
  %256 = vst [vmem:[#allocation2 + $0x50] sm:$0xff] %v240
  %257 = vst [vmem:[#allocation2 + $0x58] sm:$0xff] %v241
  %258 = vst [vmem:[#allocation2 + $0x60] sm:$0xff] %v242
  %259 = vst [vmem:[#allocation2 + $0x68] sm:$0xff] %v243
  %260 = vst [vmem:[#allocation2 + $0x70] sm:$0xff] %v244
  %261 = vst [vmem:[#allocation2 + $0x78] sm:$0xff] %v245
  // Predicated region
  $region22: #{sgconv_forward.7} parent=0 // pred_check
    %p262 = pneg %p17
  $region23: #{sgconv_forward.7} parent=0 // pred_check_branch
    %264 = sbr.rel (%p262) target = $region25
  $region24: #{sgconv_forward.7} parent=0 // pred_region
    %v265 = vld [vmem:[%s2] sm:$0xff]
    %v266 = vld [vmem:[%s2 + $0x8] sm:$0xff]
    %v267 = vld [vmem:[%s2 + $0x10] sm:$0xff]
    %v268 = vld [vmem:[%s2 + $0x18] sm:$0xff]
    %v269 = vld [vmem:[%s2 + $0x20] sm:$0xff]
    %v270 = vld [vmem:[%s2 + $0x28] sm:$0xff]
    %v271 = vld [vmem:[%s2 + $0x30] sm:$0xff]
    %v272 = vld [vmem:[%s2 + $0x38] sm:$0xff]
    %v273 = vld [vmem:[%s2 + $0x40] sm:$0xff]
    %v274 = vld [vmem:[%s2 + $0x48] sm:$0xff]
    %v275 = vld [vmem:[%s2 + $0x50] sm:$0xff]
    %v276 = vld [vmem:[%s2 + $0x58] sm:$0xff]
    %v277 = vld [vmem:[%s2 + $0x60] sm:$0xff]
    %v278 = vld [vmem:[%s2 + $0x68] sm:$0xff]
    %v279 = vld [vmem:[%s2 + $0x70] sm:$0xff]
    %v280 = vld [vmem:[%s2 + $0x78] sm:$0xff]
    %v281 = vld [vmem:[#allocation2] sm:$0xff]
    %v282 = vld [vmem:[#allocation2 + $0x8] sm:$0xff]
    %v283 = vld [vmem:[#allocation2 + $0x10] sm:$0xff]
    %v284 = vld [vmem:[#allocation2 + $0x18] sm:$0xff]
    %v285 = vld [vmem:[#allocation2 + $0x20] sm:$0xff]
    %v286 = vld [vmem:[#allocation2 + $0x28] sm:$0xff]
    %v287 = vld [vmem:[#allocation2 + $0x30] sm:$0xff]
    %v288 = vld [vmem:[#allocation2 + $0x38] sm:$0xff]
    %v289 = vld [vmem:[#allocation2 + $0x40] sm:$0xff]
    %v290 = vld [vmem:[#allocation2 + $0x48] sm:$0xff]
    %v291 = vld [vmem:[#allocation2 + $0x50] sm:$0xff]
    %v292 = vld [vmem:[#allocation2 + $0x58] sm:$0xff]
    %v293 = vld [vmem:[#allocation2 + $0x60] sm:$0xff]
    %v294 = vld [vmem:[#allocation2 + $0x68] sm:$0xff]
    %v295 = vld [vmem:[#allocation2 + $0x70] sm:$0xff]
    %v296 = vld [vmem:[#allocation2 + $0x78] sm:$0xff]
    %298 = vset.pattern.permute.xlu0 0
    %299 = vperm.xlu0 %298, %v265
    %v300 = vpop.permute.xlu0 %299
    %303 = vset.pattern.permute.xlu0 0
    %304 = vperm.xlu0 %303, %v266
    %v305 = vpop.permute.xlu0 %304
    %308 = vset.pattern.permute.xlu0 0
    %309 = vperm.xlu0 %308, %v267
    %v310 = vpop.permute.xlu0 %309
    %313 = vset.pattern.permute.xlu0 0
    %314 = vperm.xlu0 %313, %v268
    %v315 = vpop.permute.xlu0 %314
    %318 = vset.pattern.permute.xlu0 0
    %319 = vperm.xlu0 %318, %v269
    %v320 = vpop.permute.xlu0 %319
    %323 = vset.pattern.permute.xlu0 0
    %324 = vperm.xlu0 %323, %v270
    %v325 = vpop.permute.xlu0 %324
    %328 = vset.pattern.permute.xlu0 0
    %329 = vperm.xlu0 %328, %v271
    %v330 = vpop.permute.xlu0 %329
    %333 = vset.pattern.permute.xlu0 0
    %334 = vperm.xlu0 %333, %v272
    %v335 = vpop.permute.xlu0 %334
    %338 = vset.pattern.permute.xlu0 0
    %339 = vperm.xlu0 %338, %v273
    %v340 = vpop.permute.xlu0 %339
    %343 = vset.pattern.permute.xlu0 0
    %344 = vperm.xlu0 %343, %v274
    %v345 = vpop.permute.xlu0 %344
    %348 = vset.pattern.permute.xlu0 0
    %349 = vperm.xlu0 %348, %v275
    %v350 = vpop.permute.xlu0 %349
    %353 = vset.pattern.permute.xlu0 0
    %354 = vperm.xlu0 %353, %v276
    %v355 = vpop.permute.xlu0 %354
    %358 = vset.pattern.permute.xlu0 0
    %359 = vperm.xlu0 %358, %v277
    %v360 = vpop.permute.xlu0 %359
    %363 = vset.pattern.permute.xlu0 0
    %364 = vperm.xlu0 %363, %v278
    %v365 = vpop.permute.xlu0 %364
    %368 = vset.pattern.permute.xlu0 0
    %369 = vperm.xlu0 %368, %v279
    %v370 = vpop.permute.xlu0 %369
    %373 = vset.pattern.permute.xlu0 0
    %374 = vperm.xlu0 %373, %v280
    %v375 = vpop.permute.xlu0 %374
    %v377 = vmul.f32 %v300, %v281
    %v378 = vmul.f32 %v305, %v282
    %v379 = vmul.f32 %v310, %v283
    %v380 = vmul.f32 %v315, %v284
    %v381 = vmul.f32 %v320, %v285
    %v382 = vmul.f32 %v325, %v286
    %v383 = vmul.f32 %v330, %v287
    %v384 = vmul.f32 %v335, %v288
    %v385 = vmul.f32 %v340, %v289
    %v386 = vmul.f32 %v345, %v290
    %v387 = vmul.f32 %v350, %v291
    %v388 = vmul.f32 %v355, %v292
    %v389 = vmul.f32 %v360, %v293
    %v390 = vmul.f32 %v365, %v294
    %v391 = vmul.f32 %v370, %v295
    %v392 = vmul.f32 %v375, %v296
    %v393 = vld [vmem:[%s3] sm:$0x1]
    %v395 = vlaneseq
    %v396 = vshrl.u32 %v395, 7
    %v397 = vsub.s32 0, %v396
    %v398 = vrot.slane %v393, %v397
    %v400 = vadd.f32 %v377, %v398
    %v401 = vadd.f32 %v378, %v398
    %v402 = vadd.f32 %v379, %v398
    %v403 = vadd.f32 %v380, %v398
    %v404 = vadd.f32 %v381, %v398
    %v405 = vadd.f32 %v382, %v398
    %v406 = vadd.f32 %v383, %v398
    %v407 = vadd.f32 %v384, %v398
    %v408 = vadd.f32 %v385, %v398
    %v409 = vadd.f32 %v386, %v398
    %v410 = vadd.f32 %v387, %v398
    %v411 = vadd.f32 %v388, %v398
    %v412 = vadd.f32 %v389, %v398
    %v413 = vadd.f32 %v390, %v398
    %v414 = vadd.f32 %v391, %v398
    %v415 = vadd.f32 %v392, %v398
    %416 = vst [vmem:[%s4] sm:$0xff] %v400
    %417 = vst [vmem:[%s4 + $0x8] sm:$0xff] %v401
    %418 = vst [vmem:[%s4 + $0x10] sm:$0xff] %v402
    %419 = vst [vmem:[%s4 + $0x18] sm:$0xff] %v403
    %420 = vst [vmem:[%s4 + $0x20] sm:$0xff] %v404
    %421 = vst [vmem:[%s4 + $0x28] sm:$0xff] %v405
    %422 = vst [vmem:[%s4 + $0x30] sm:$0xff] %v406
    %423 = vst [vmem:[%s4 + $0x38] sm:$0xff] %v407
    %424 = vst [vmem:[%s4 + $0x40] sm:$0xff] %v408
    %425 = vst [vmem:[%s4 + $0x48] sm:$0xff] %v409
    %426 = vst [vmem:[%s4 + $0x50] sm:$0xff] %v410
    %427 = vst [vmem:[%s4 + $0x58] sm:$0xff] %v411
    %428 = vst [vmem:[%s4 + $0x60] sm:$0xff] %v412
    %429 = vst [vmem:[%s4 + $0x68] sm:$0xff] %v413
    %430 = vst [vmem:[%s4 + $0x70] sm:$0xff] %v414
    %431 = vst [vmem:[%s4 + $0x78] sm:$0xff] %v415
  $region25: #{sgconv_forward.7} parent=0 // pred_fallthru
    _
  // Predicated region
  $region26: #{sgconv_forward.7} parent=0 // pred_check
    _
  $region27: #{sgconv_forward.7} parent=0 // pred_check_branch
    %433 = sbr.rel (0) target = $region29
  $region28: #{sgconv_forward.7} parent=0 // pred_region
    _
  $region29: #{sgconv_forward.7} parent=0 // pred_fallthru
    _
  // Predicated region
  $region30: #{sgconv_forward.7} parent=0 // pred_check
    _
  $region31: #{sgconv_forward.7} parent=0 // pred_check_branch
    %435 = sbr.rel (0) target = $region33
  $region32: #{sgconv_forward.7} parent=0 // pred_region
    _
  $region33: #{sgconv_forward.7} parent=0 // pred_fallthru
    _

</llo_original>
